<compile_context>
chip_gen: v5e
topology: v5e:2x2
jax: 0.10.0
libtpu: 0.0.40
codegen_flags: <defaults>
</compile_context>

<pallas_src>
import functools

import jax
import jax.numpy as jnp
from jax.experimental import pallas as pl
from jax.experimental.pallas import tpu as pltpu


# ---------------------------------------------------------------------------
# Tiled projection matmul: y = x @ w   (x: (M, K), w: (K, N))
# ---------------------------------------------------------------------------
def matmul_kernel(x_ref, w_ref, o_ref, acc_ref):
    @pl.when(pl.program_id(2) == 0)
    def _():
        acc_ref[...] = jnp.zeros_like(acc_ref)

    acc_ref[...] += jnp.dot(
        x_ref[...], w_ref[...], preferred_element_type=jnp.float32
    )

    @pl.when(pl.program_id(2) == pl.num_programs(2) - 1)
    def _():
        o_ref[...] = acc_ref[...].astype(o_ref.dtype)


def _pick_tile(dim, candidates):
    """Largest candidate tile that divides `dim`; else use the full dim."""
    for c in candidates:
        if dim % c == 0:
            return c
    return dim


def matmul(x, w, *, tm_max=256, tn_max=256, tk_max=512):
    M, K = x.shape
    K2, N = w.shape
    assert K == K2
    # tm may be any multiple of 8; tn/tk must be multiples of 128 (lane dim).
    tm = _pick_tile(M, (tm_max, 128, 64, 32, 16, 8))
    tn = _pick_tile(N, (tn_max, 128))
    tk = _pick_tile(K, (tk_max, 256, 128))
    grid = (M // tm, N // tn, K // tk)

    cost = pl.CostEstimate(
        flops=2 * M * N * K,
        transcendentals=0,
        bytes_accessed=(M * K + K * N + M * N) * x.dtype.itemsize,
    )
    return pl.pallas_call(
        matmul_kernel,
        out_shape=jax.ShapeDtypeStruct((M, N), x.dtype),
        grid_spec=pltpu.PrefetchScalarGridSpec(
            num_scalar_prefetch=0,
            grid=grid,
            in_specs=[
                pl.BlockSpec((tm, tk), lambda i, j, k: (i, k)),
                pl.BlockSpec((tk, tn), lambda i, j, k: (k, j)),
            ],
            out_specs=pl.BlockSpec((tm, tn), lambda i, j, k: (i, j)),
            scratch_shapes=[pltpu.VMEM((tm, tn), jnp.float32)],
        ),
        compiler_params=pltpu.CompilerParams(
            dimension_semantics=("parallel", "parallel", "arbitrary")
        ),
        cost_estimate=cost,
    )(x, w)


# ---------------------------------------------------------------------------
# Attention kernel: one batch element per grid step, all heads fused.
#   qkv block: (1, S, 3*D);  cos/sin: (S, HD);  bias: (NH,) in SMEM
#   output block: (1, S, D)  -> lane-dense store (D = NH*HD = multiple of 128)
# ---------------------------------------------------------------------------
def attn_kernel(qkv_ref, cos_ref, sin_ref, bias_ref, o_ref, *, num_heads, head_dim):
    D = num_heads * head_dim
    half = head_dim // 2
    scale = 1.0 / (head_dim ** 0.5)

    cos = cos_ref[...]  # (S, HD) f32
    sin = sin_ref[...]  # (S, HD) f32

    # 128-aligned lane slices of the fused qkv block: (S, D) each.
    q2d = qkv_ref[0, :, pl.ds(0 * D, D)].astype(jnp.float32)
    k2d = qkv_ref[0, :, pl.ds(1 * D, D)].astype(jnp.float32)
    v2d = qkv_ref[0, :, pl.ds(2 * D, D)].astype(jnp.float32)

    def rope(t):  # t: (S, HD) f32
        t1 = t[:, :half]
        t2 = t[:, half:]
        rot = jnp.concatenate([-t2, t1], axis=-1)  # rotate_half
        return t * cos + rot * sin

    outs = []
    for h in range(num_heads):  # static unroll over heads
        sl = slice(h * head_dim, (h + 1) * head_dim)
        qh = rope(q2d[:, sl]) * scale  # fold 1/sqrt(HD) into q, not (S,S) scores
        kh = rope(k2d[:, sl])
        vh = v2d[:, sl]

        s = jnp.dot(qh, kh.T, preferred_element_type=jnp.float32)  # (S, S)
        # Per-head scalar bias read from SMEM (softmax-shift-invariant; kept
        # only to mirror the PyTorch module's semantics).
        s = s + bias_ref[h]

        m = jnp.max(s, axis=-1, keepdims=True)
        e = jnp.exp(s - m)
        p = e / jnp.sum(e, axis=-1, keepdims=True)
        outs.append(jnp.dot(p, vh, preferred_element_type=jnp.float32))

    # Single lane-dense (S, D) store.
    o_ref[0] = jnp.concatenate(outs, axis=-1).astype(o_ref.dtype)


def attention_core(qkv, cos, sin, bias, num_heads, head_dim):
    B, S, three_d = qkv.shape
    D = num_heads * head_dim
    assert three_d == 3 * D

    kernel = functools.partial(attn_kernel, num_heads=num_heads, head_dim=head_dim)
    cost = pl.CostEstimate(
        flops=4 * B * num_heads * S * S * head_dim,
        transcendentals=B * num_heads * S * S,
        bytes_accessed=(qkv.size + B * S * D + 2 * S * head_dim + num_heads) * 4,
    )
    return pl.pallas_call(
        kernel,
        out_shape=jax.ShapeDtypeStruct((B, S, D), qkv.dtype),
        grid=(B,),
        in_specs=[
            pl.BlockSpec((1, S, 3 * D), lambda b: (b, 0, 0)),
            pl.BlockSpec((S, head_dim), lambda b: (0, 0)),
            pl.BlockSpec((S, head_dim), lambda b: (0, 0)),
            pl.BlockSpec(memory_space=pltpu.MemorySpace.SMEM),
        ],
        out_specs=pl.BlockSpec((1, S, D), lambda b: (b, 0, 0)),
        compiler_params=pltpu.CompilerParams(dimension_semantics=("parallel",)),
        cost_estimate=cost,
    )(qkv, cos, sin, bias)


# ---------------------------------------------------------------------------
# Full HealthAttention forward
# ---------------------------------------------------------------------------
def rotary_cos_sin(seq_len, head_dim, base=10000.0):
    inv_freq = 1.0 / (base ** (jnp.arange(0, head_dim, 2, dtype=jnp.float32) / head_dim))
    t = jnp.arange(seq_len, dtype=jnp.float32)
    freqs = jnp.outer(t, inv_freq)                  # (S, HD/2)
    emb = jnp.concatenate([freqs, freqs], axis=-1)  # (S, HD)
    return jnp.cos(emb), jnp.sin(emb)


def health_attention(x, wq, wk, wv, wo, medical_bias, num_heads):
    B, S, D = x.shape
    head_dim = D // num_heads

    # Fused QKV projection: one pipelined GEMM, x read from HBM once.
    wqkv = jnp.concatenate([wq, wk, wv], axis=1)  # (D, 3D)
    qkv = matmul(x.reshape(B * S, D), wqkv)       # (B*S, 3D)
    qkv = qkv.reshape(B, S, 3 * D)                # free reshape (no transpose)

    cos, sin = rotary_cos_sin(S, head_dim)
    bias = medical_bias.reshape(num_heads).astype(jnp.float32)

    attn = attention_core(qkv, cos, sin, bias, num_heads, head_dim)  # (B, S, D)
    out = matmul(attn.reshape(B * S, D), wo).reshape(B, S, D)
    return out


# ---------------------------------------------------------------------------
# Pure-JAX reference (mirrors the PyTorch module) for verification
# ---------------------------------------------------------------------------
def reference(x, wq, wk, wv, wo, medical_bias, num_heads):
    B, S, D = x.shape
    HD = D // num_heads
    q = (x @ wq).reshape(B, S, num_heads, HD).transpose(0, 2, 1, 3)
    k = (x @ wk).reshape(B, S, num_heads, HD).transpose(0, 2, 1, 3)
    v = (x @ wv).reshape(B, S, num_heads, HD).transpose(0, 2, 1, 3)
    cos, sin = rotary_cos_sin(S, HD)

    def rope(t):
        half = HD // 2
        rot = jnp.concatenate([-t[..., half:], t[..., :half]], axis=-1)
        return t * cos[None, None] + rot * sin[None, None]

    q, k = rope(q), rope(k)
    scores = jnp.einsum("bhqd,bhkd->bhqk", q, k) / jnp.sqrt(jnp.float32(HD))
    scores = scores + medical_bias
    probs = jax.nn.softmax(scores, axis=-1)
    out = jnp.einsum("bhqk,bhkd->bhqd", probs, v)
    out = out.transpose(0, 2, 1, 3).reshape(B, S, D)
    return out @ wo


if __name__ == "__main__":
    # Small config consistent with the module: hidden divisible by num_heads.
    B, S, D, NH = 2, 16, 128, 4

    key = jax.random.PRNGKey(0)
    kx, kq, kk, kv, ko = jax.random.split(key, 5)

    x = jax.random.normal(kx, (B, S, D), dtype=jnp.float32)
    scale = 1.0 / jnp.sqrt(jnp.float32(D))
    # Weights stored as (in, out) == PyTorch W.T; deterministic init.
    wq = jax.random.normal(kq, (D, D), dtype=jnp.float32) * scale
    wk = jax.random.normal(kk, (D, D), dtype=jnp.float32) * scale
    wv = jax.random.normal(kv, (D, D), dtype=jnp.float32) * scale
    wo = jax.random.normal(ko, (D, D), dtype=jnp.float32) * scale
    # nn.Parameter(torch.zeros(1, NH, 1, 1)) at init.
    medical_bias = jnp.zeros((1, NH, 1, 1), dtype=jnp.float32)

    fwd = jax.jit(functools.partial(health_attention, num_heads=NH))
    out = jax.block_until_ready(fwd(x, wq, wk, wv, wo, medical_bias))

    ref = reference(x, wq, wk, wv, wo, medical_bias, NH)
    assert out.shape == (B, S, D)
    assert jnp.allclose(out, ref, atol=1e-4, rtol=1e-4), "mismatch vs reference"

    print("KERNEL_OK")
</pallas_src>

<mosaic_0001>
module attributes {stable_mosaic.version = 11 : i64} {
  func.func @matmul_kernel(%arg0: i32, %arg1: i32, %arg2: i32, %arg3: memref<32x128xf32, #tpu.memory_space<vmem>>, %arg4: memref<128x128xf32, #tpu.memory_space<vmem>>, %arg5: memref<32x128xf32, #tpu.memory_space<vmem>>, %arg6: memref<32x128xf32, #tpu.memory_space<vmem>>) attributes {dimension_semantics = [#tpu.dimension_semantics<parallel>, #tpu.dimension_semantics<parallel>, #tpu.dimension_semantics<arbitrary>], iteration_bounds = array<i64: 1, 3, 1>, scalar_prefetch = 0 : i64, scratch_operands = 1 : i64, tpu.core_type = #tpu.core_type<tc>, window_params = [{transform_indices = @transform_0, window_bounds = array<i64: 32, 128>}, {transform_indices = @transform_1, window_bounds = array<i64: 128, 128>}, {transform_indices = @transform_2, window_bounds = array<i64: 32, 128>}]} {
    %c0_i32 = arith.constant 0 : i32
    %0 = arith.cmpi eq, %arg2, %c0_i32 : i32
    %1 = arith.extui %0 : i1 to i32
    %c0_i32_0 = arith.constant 0 : i32
    %2 = arith.cmpi ne, %1, %c0_i32_0 : i32
    scf.if %2 {
      %cst_10 = arith.constant 0.000000e+00 : f32
      %12 = vector.broadcast %cst_10 : f32 to vector<32x128xf32>
      %c0_11 = arith.constant 0 : index
      %c0_12 = arith.constant 0 : index
      %13 = vector.load %arg6[%c0_11, %c0_12] : memref<32x128xf32, #tpu.memory_space<vmem>>, vector<32x128xf32>
      tpu.vector_store %arg6[%c0_11, %c0_12], %12 {strides = array<i32>} : memref<32x128xf32, #tpu.memory_space<vmem>>, vector<32x128xf32>,
    } else {
    }
    %c0 = arith.constant 0 : index
    %c0_1 = arith.constant 0 : index
    %3 = vector.load %arg6[%c0, %c0_1] : memref<32x128xf32, #tpu.memory_space<vmem>>, vector<32x128xf32>
    %c0_2 = arith.constant 0 : index
    %c0_3 = arith.constant 0 : index
    %4 = vector.load %arg3[%c0_2, %c0_3] : memref<32x128xf32, #tpu.memory_space<vmem>>, vector<32x128xf32>
    %c0_4 = arith.constant 0 : index
    %c0_5 = arith.constant 0 : index
    %5 = vector.load %arg4[%c0_4, %c0_5] : memref<128x128xf32, #tpu.memory_space<vmem>>, vector<128x128xf32>
    %cst = arith.constant dense<0.000000e+00> : vector<32x128xf32>
    %6 = tpu.matmul %4, %5, %cst {dimension_numbers = #tpu.dot_dimension_numbers<[1], [0], [0], [1], [0, 0, 1, 1], [], []>} : vector<32x128xf32>, vector<128x128xf32>, vector<32x128xf32> -> vector<32x128xf32>
    %7 = arith.addf %3, %6 : vector<32x128xf32>
    %c0_6 = arith.constant 0 : index
    %c0_7 = arith.constant 0 : index
    %8 = vector.load %arg6[%c0_6, %c0_7] : memref<32x128xf32, #tpu.memory_space<vmem>>, vector<32x128xf32>
    tpu.vector_store %arg6[%c0_6, %c0_7], %7 {strides = array<i32>} : memref<32x128xf32, #tpu.memory_space<vmem>>, vector<32x128xf32>,
    %c0_i32_8 = arith.constant 0 : i32
    %9 = arith.cmpi eq, %arg2, %c0_i32_8 : i32
    %10 = arith.extui %9 : i1 to i32
    %c0_i32_9 = arith.constant 0 : i32
    %11 = arith.cmpi ne, %10, %c0_i32_9 : i32
    scf.if %11 {
      %c0_10 = arith.constant 0 : index
      %c0_11 = arith.constant 0 : index
      %12 = vector.load %arg6[%c0_10, %c0_11] : memref<32x128xf32, #tpu.memory_space<vmem>>, vector<32x128xf32>
      %c0_12 = arith.constant 0 : index
      %c0_13 = arith.constant 0 : index
      %13 = vector.load %arg5[%c0_12, %c0_13] : memref<32x128xf32, #tpu.memory_space<vmem>>, vector<32x128xf32>
      tpu.vector_store %arg5[%c0_12, %c0_13], %12 {strides = array<i32>} : memref<32x128xf32, #tpu.memory_space<vmem>>, vector<32x128xf32>,
    } else {
    }
    return
  }
  func.func @transform_0(%arg0: i32, %arg1: i32, %arg2: i32) -> (i32, i32) {
    %c0_i32 = arith.constant 0 : i32
    return %arg0, %arg2 : i32, i32
  }
  func.func @transform_1(%arg0: i32, %arg1: i32, %arg2: i32) -> (i32, i32) {
    %c0_i32 = arith.constant 0 : i32
    return %arg2, %arg1 : i32, i32
  }
  func.func @transform_2(%arg0: i32, %arg1: i32, %arg2: i32) -> (i32, i32) {
    %c0_i32 = arith.constant 0 : i32
    return %arg0, %arg1 : i32, i32
  }
}

module attributes {stable_mosaic.version = 11 : i64} {
  func.func @matmul_kernel(%arg0: i32, %arg1: i32, %arg2: i32, %arg3: memref<32x128xf32, #tpu.memory_space<vmem>>, %arg4: memref<128x128xf32, #tpu.memory_space<vmem>>, %arg5: memref<32x128xf32, #tpu.memory_space<vmem>>, %arg6: memref<32x128xf32, #tpu.memory_space<vmem>>) attributes {dimension_semantics = [#tpu.dimension_semantics<parallel>, #tpu.dimension_semantics<parallel>, #tpu.dimension_semantics<arbitrary>], iteration_bounds = array<i64: 1, 1, 1>, scalar_prefetch = 0 : i64, scratch_operands = 1 : i64, tpu.core_type = #tpu.core_type<tc>, window_params = [{transform_indices = @transform_0, window_bounds = array<i64: 32, 128>}, {transform_indices = @transform_1, window_bounds = array<i64: 128, 128>}, {transform_indices = @transform_2, window_bounds = array<i64: 32, 128>}]} {
    %c0_i32 = arith.constant 0 : i32
    %0 = arith.cmpi eq, %arg2, %c0_i32 : i32
    %1 = arith.extui %0 : i1 to i32
    %c0_i32_0 = arith.constant 0 : i32
    %2 = arith.cmpi ne, %1, %c0_i32_0 : i32
    scf.if %2 {
      %cst_10 = arith.constant 0.000000e+00 : f32
      %12 = vector.broadcast %cst_10 : f32 to vector<32x128xf32>
      %c0_11 = arith.constant 0 : index
      %c0_12 = arith.constant 0 : index
      %13 = vector.load %arg6[%c0_11, %c0_12] : memref<32x128xf32, #tpu.memory_space<vmem>>, vector<32x128xf32>
      tpu.vector_store %arg6[%c0_11, %c0_12], %12 {strides = array<i32>} : memref<32x128xf32, #tpu.memory_space<vmem>>, vector<32x128xf32>,
    } else {
    }
    %c0 = arith.constant 0 : index
    %c0_1 = arith.constant 0 : index
    %3 = vector.load %arg6[%c0, %c0_1] : memref<32x128xf32, #tpu.memory_space<vmem>>, vector<32x128xf32>
    %c0_2 = arith.constant 0 : index
    %c0_3 = arith.constant 0 : index
    %4 = vector.load %arg3[%c0_2, %c0_3] : memref<32x128xf32, #tpu.memory_space<vmem>>, vector<32x128xf32>
    %c0_4 = arith.constant 0 : index
    %c0_5 = arith.constant 0 : index
    %5 = vector.load %arg4[%c0_4, %c0_5] : memref<128x128xf32, #tpu.memory_space<vmem>>, vector<128x128xf32>
    %cst = arith.constant dense<0.000000e+00> : vector<32x128xf32>
    %6 = tpu.matmul %4, %5, %cst {dimension_numbers = #tpu.dot_dimension_numbers<[1], [0], [0], [1], [0, 0, 1, 1], [], []>} : vector<32x128xf32>, vector<128x128xf32>, vector<32x128xf32> -> vector<32x128xf32>
    %7 = arith.addf %3, %6 : vector<32x128xf32>
    %c0_6 = arith.constant 0 : index
    %c0_7 = arith.constant 0 : index
    %8 = vector.load %arg6[%c0_6, %c0_7] : memref<32x128xf32, #tpu.memory_space<vmem>>, vector<32x128xf32>
    tpu.vector_store %arg6[%c0_6, %c0_7], %7 {strides = array<i32>} : memref<32x128xf32, #tpu.memory_space<vmem>>, vector<32x128xf32>,
    %c0_i32_8 = arith.constant 0 : i32
    %9 = arith.cmpi eq, %arg2, %c0_i32_8 : i32
    %10 = arith.extui %9 : i1 to i32
    %c0_i32_9 = arith.constant 0 : i32
    %11 = arith.cmpi ne, %10, %c0_i32_9 : i32
    scf.if %11 {
      %c0_10 = arith.constant 0 : index
      %c0_11 = arith.constant 0 : index
      %12 = vector.load %arg6[%c0_10, %c0_11] : memref<32x128xf32, #tpu.memory_space<vmem>>, vector<32x128xf32>
      %c0_12 = arith.constant 0 : index
      %c0_13 = arith.constant 0 : index
      %13 = vector.load %arg5[%c0_12, %c0_13] : memref<32x128xf32, #tpu.memory_space<vmem>>, vector<32x128xf32>
      tpu.vector_store %arg5[%c0_12, %c0_13], %12 {strides = array<i32>} : memref<32x128xf32, #tpu.memory_space<vmem>>, vector<32x128xf32>,
    } else {
    }
    return
  }
  func.func @transform_0(%arg0: i32, %arg1: i32, %arg2: i32) -> (i32, i32) {
    %c0_i32 = arith.constant 0 : i32
    return %arg0, %arg2 : i32, i32
  }
  func.func @transform_1(%arg0: i32, %arg1: i32, %arg2: i32) -> (i32, i32) {
    %c0_i32 = arith.constant 0 : i32
    return %arg2, %arg1 : i32, i32
  }
  func.func @transform_2(%arg0: i32, %arg1: i32, %arg2: i32) -> (i32, i32) {
    %c0_i32 = arith.constant 0 : i32
    return %arg0, %arg1 : i32, i32
  }
}

module attributes {stable_mosaic.version = 11 : i64} {
  func.func @attn_kernel(%arg0: i32, %arg1: memref<1x16x384xf32, #tpu.memory_space<vmem>>, %arg2: memref<16x32xf32, #tpu.memory_space<vmem>>, %arg3: memref<16x32xf32, #tpu.memory_space<vmem>>, %arg4: memref<4xf32, #tpu.memory_space<smem>>, %arg5: memref<1x16x128xf32, #tpu.memory_space<vmem>>) attributes {dimension_semantics = [#tpu.dimension_semantics<parallel>], iteration_bounds = array<i64: 2>, scalar_prefetch = 0 : i64, scratch_operands = 0 : i64, tpu.core_type = #tpu.core_type<tc>, window_params = [{transform_indices = @transform_0, window_bounds = array<i64: 1, 16, 384>}, {pipeline_mode = #tpu.pipeline_mode<synchronous>, transform_indices = @transform_1, window_bounds = array<i64: 16, 32>}, {pipeline_mode = #tpu.pipeline_mode<synchronous>, transform_indices = @transform_2, window_bounds = array<i64: 16, 32>}, {transform_indices = @transform_3, window_bounds = array<i64: 4>}, {transform_indices = @transform_4, window_bounds = array<i64: 1, 16, 128>}]} {
    %c0 = arith.constant 0 : index
    %c0_0 = arith.constant 0 : index
    %0 = vector.load %arg2[%c0, %c0_0] : memref<16x32xf32, #tpu.memory_space<vmem>>, vector<16x32xf32>
    %c0_1 = arith.constant 0 : index
    %c0_2 = arith.constant 0 : index
    %1 = vector.load %arg3[%c0_1, %c0_2] : memref<16x32xf32, #tpu.memory_space<vmem>>, vector<16x32xf32>
    %c0_3 = arith.constant 0 : index
    %c0_4 = arith.constant 0 : index
    %c0_5 = arith.constant 0 : index
    %2 = vector.load %arg1[%c0_3, %c0_4, %c0_5] : memref<1x16x384xf32, #tpu.memory_space<vmem>>, vector<1x16x128xf32>
    %3 = vector.shape_cast %2 : vector<1x16x128xf32> to vector<16x128xf32>
    %c0_6 = arith.constant 0 : index
    %c0_7 = arith.constant 0 : index
    %c128 = arith.constant 128 : index
    %4 = vector.load %arg1[%c0_6, %c0_7, %c128] : memref<1x16x384xf32, #tpu.memory_space<vmem>>, vector<1x16x128xf32>
    %5 = vector.shape_cast %4 : vector<1x16x128xf32> to vector<16x128xf32>
    %c0_8 = arith.constant 0 : index
    %c0_9 = arith.constant 0 : index
    %c256 = arith.constant 256 : index
    %6 = vector.load %arg1[%c0_8, %c0_9, %c256] : memref<1x16x384xf32, #tpu.memory_space<vmem>>, vector<1x16x128xf32>
    %7 = vector.shape_cast %6 : vector<1x16x128xf32> to vector<16x128xf32>
    %8 = vector.extract_strided_slice %3 {offsets = [0, 0], sizes = [16, 32], strides = [1, 1]} : vector<16x128xf32> to vector<16x32xf32>
    %9 = vector.extract_strided_slice %8 {offsets = [0, 0], sizes = [16, 16], strides = [1, 1]} : vector<16x32xf32> to vector<16x16xf32>
    %10 = vector.extract_strided_slice %8 {offsets = [0, 16], sizes = [16, 16], strides = [1, 1]} : vector<16x32xf32> to vector<16x16xf32>
    %cst = arith.constant 0.000000e+00 : f32
    %11 = vector.broadcast %cst : f32 to vector<16x16xf32>
    %12 = arith.subf %11, %10 : vector<16x16xf32>
    %13 = tpu.concatenate %12, %9 in 1 : vector<16x16xf32>, vector<16x16xf32> -> vector<16x32xf32>
    %14 = arith.mulf %8, %0 : vector<16x32xf32>
    %15 = arith.mulf %13, %1 : vector<16x32xf32>
    %16 = arith.addf %14, %15 : vector<16x32xf32>
    %cst_10 = arith.constant 0.176776692 : f32
    %17 = vector.broadcast %cst_10 : f32 to vector<16x32xf32>
    %18 = arith.mulf %16, %17 : vector<16x32xf32>
    %19 = vector.extract_strided_slice %5 {offsets = [0, 0], sizes = [16, 32], strides = [1, 1]} : vector<16x128xf32> to vector<16x32xf32>
    %20 = vector.extract_strided_slice %19 {offsets = [0, 0], sizes = [16, 16], strides = [1, 1]} : vector<16x32xf32> to vector<16x16xf32>
    %21 = vector.extract_strided_slice %19 {offsets = [0, 16], sizes = [16, 16], strides = [1, 1]} : vector<16x32xf32> to vector<16x16xf32>
    %cst_11 = arith.constant 0.000000e+00 : f32
    %22 = vector.broadcast %cst_11 : f32 to vector<16x16xf32>
    %23 = arith.subf %22, %21 : vector<16x16xf32>
    %24 = tpu.concatenate %23, %20 in 1 : vector<16x16xf32>, vector<16x16xf32> -> vector<16x32xf32>
    %25 = arith.mulf %19, %0 : vector<16x32xf32>
    %26 = arith.mulf %24, %1 : vector<16x32xf32>
    %27 = arith.addf %25, %26 : vector<16x32xf32>
    %28 = vector.extract_strided_slice %7 {offsets = [0, 0], sizes = [16, 32], strides = [1, 1]} : vector<16x128xf32> to vector<16x32xf32>
    %29 = tpu.transpose %27, [1, 0] : vector<16x32xf32> -> vector<32x16xf32>
    %cst_12 = arith.constant dense<0.000000e+00> : vector<16x16xf32>
    %30 = tpu.matmul %18, %29, %cst_12 {dimension_numbers = #tpu.dot_dimension_numbers<[1], [0], [0], [1], [0, 0, 1, 1], [], []>} : vector<16x32xf32>, vector<32x16xf32>, vector<16x16xf32> -> vector<16x16xf32>
    %c0_13 = arith.constant 0 : index
    %31 = memref.load %arg4[%c0_13] : memref<4xf32, #tpu.memory_space<smem>>
    %32 = vector.broadcast %31 : f32 to vector<16x16xf32>
    %33 = arith.addf %30, %32 : vector<16x16xf32>
    %cst_14 = arith.constant dense<0xFF800000> : vector<16xf32>
    %34 = vector.multi_reduction <maximumf>, %33, %cst_14 [1] : vector<16x16xf32> to vector<16xf32>
    %35 = vector.shape_cast %34 : vector<16xf32> to vector<16x1xf32>
    %36 = vector.broadcast %35 : vector<16x1xf32> to vector<16x16xf32>
    %37 = arith.subf %33, %36 : vector<16x16xf32>
    %38 = math.exp %37 : vector<16x16xf32>
    %cst_15 = arith.constant dense<0.000000e+00> : vector<16xf32>
    %39 = vector.multi_reduction <add>, %38, %cst_15 [1] : vector<16x16xf32> to vector<16xf32>
    %40 = vector.shape_cast %39 : vector<16xf32> to vector<16x1xf32>
    %41 = vector.broadcast %40 : vector<16x1xf32> to vector<16x16xf32>
    %42 = arith.divf %38, %41 : vector<16x16xf32>
    %cst_16 = arith.constant dense<0.000000e+00> : vector<16x32xf32>
    %43 = tpu.matmul %42, %28, %cst_16 {dimension_numbers = #tpu.dot_dimension_numbers<[1], [0], [0], [1], [0, 0, 1, 1], [], []>} : vector<16x16xf32>, vector<16x32xf32>, vector<16x32xf32> -> vector<16x32xf32>
    %44 = vector.extract_strided_slice %3 {offsets = [0, 32], sizes = [16, 32], strides = [1, 1]} : vector<16x128xf32> to vector<16x32xf32>
    %45 = vector.extract_strided_slice %44 {offsets = [0, 0], sizes = [16, 16], strides = [1, 1]} : vector<16x32xf32> to vector<16x16xf32>
    %46 = vector.extract_strided_slice %44 {offsets = [0, 16], sizes = [16, 16], strides = [1, 1]} : vector<16x32xf32> to vector<16x16xf32>
    %cst_17 = arith.constant 0.000000e+00 : f32
    %47 = vector.broadcast %cst_17 : f32 to vector<16x16xf32>
    %48 = arith.subf %47, %46 : vector<16x16xf32>
    %49 = tpu.concatenate %48, %45 in 1 : vector<16x16xf32>, vector<16x16xf32> -> vector<16x32xf32>
    %50 = arith.mulf %44, %0 : vector<16x32xf32>
    %51 = arith.mulf %49, %1 : vector<16x32xf32>
    %52 = arith.addf %50, %51 : vector<16x32xf32>
    %cst_18 = arith.constant 0.176776692 : f32
    %53 = vector.broadcast %cst_18 : f32 to vector<16x32xf32>
    %54 = arith.mulf %52, %53 : vector<16x32xf32>
    %55 = vector.extract_strided_slice %5 {offsets = [0, 32], sizes = [16, 32], strides = [1, 1]} : vector<16x128xf32> to vector<16x32xf32>
    %56 = vector.extract_strided_slice %55 {offsets = [0, 0], sizes = [16, 16], strides = [1, 1]} : vector<16x32xf32> to vector<16x16xf32>
    %57 = vector.extract_strided_slice %55 {offsets = [0, 16], sizes = [16, 16], strides = [1, 1]} : vector<16x32xf32> to vector<16x16xf32>
    %cst_19 = arith.constant 0.000000e+00 : f32
    %58 = vector.broadcast %cst_19 : f32 to vector<16x16xf32>
    %59 = arith.subf %58, %57 : vector<16x16xf32>
    %60 = tpu.concatenate %59, %56 in 1 : vector<16x16xf32>, vector<16x16xf32> -> vector<16x32xf32>
    %61 = arith.mulf %55, %0 : vector<16x32xf32>
    %62 = arith.mulf %60, %1 : vector<16x32xf32>
    %63 = arith.addf %61, %62 : vector<16x32xf32>
    %64 = vector.extract_strided_slice %7 {offsets = [0, 32], sizes = [16, 32], strides = [1, 1]} : vector<16x128xf32> to vector<16x32xf32>
    %65 = tpu.transpose %63, [1, 0] : vector<16x32xf32> -> vector<32x16xf32>
    %cst_20 = arith.constant dense<0.000000e+00> : vector<16x16xf32>
    %66 = tpu.matmul %54, %65, %cst_20 {dimension_numbers = #tpu.dot_dimension_numbers<[1], [0], [0], [1], [0, 0, 1, 1], [], []>} : vector<16x32xf32>, vector<32x16xf32>, vector<16x16xf32> -> vector<16x16xf32>
    %c1 = arith.constant 1 : index
    %67 = memref.load %arg4[%c1] : memref<4xf32, #tpu.memory_space<smem>>
    %68 = vector.broadcast %67 : f32 to vector<16x16xf32>
    %69 = arith.addf %66, %68 : vector<16x16xf32>
    %cst_21 = arith.constant dense<0xFF800000> : vector<16xf32>
    %70 = vector.multi_reduction <maximumf>, %69, %cst_21 [1] : vector<16x16xf32> to vector<16xf32>
    %71 = vector.shape_cast %70 : vector<16xf32> to vector<16x1xf32>
    %72 = vector.broadcast %71 : vector<16x1xf32> to vector<16x16xf32>
    %73 = arith.subf %69, %72 : vector<16x16xf32>
    %74 = math.exp %73 : vector<16x16xf32>
    %cst_22 = arith.constant dense<0.000000e+00> : vector<16xf32>
    %75 = vector.multi_reduction <add>, %74, %cst_22 [1] : vector<16x16xf32> to vector<16xf32>
    %76 = vector.shape_cast %75 : vector<16xf32> to vector<16x1xf32>
    %77 = vector.broadcast %76 : vector<16x1xf32> to vector<16x16xf32>
    %78 = arith.divf %74, %77 : vector<16x16xf32>
    %cst_23 = arith.constant dense<0.000000e+00> : vector<16x32xf32>
    %79 = tpu.matmul %78, %64, %cst_23 {dimension_numbers = #tpu.dot_dimension_numbers<[1], [0], [0], [1], [0, 0, 1, 1], [], []>} : vector<16x16xf32>, vector<16x32xf32>, vector<16x32xf32> -> vector<16x32xf32>
    %80 = vector.extract_strided_slice %3 {offsets = [0, 64], sizes = [16, 32], strides = [1, 1]} : vector<16x128xf32> to vector<16x32xf32>
    %81 = vector.extract_strided_slice %80 {offsets = [0, 0], sizes = [16, 16], strides = [1, 1]} : vector<16x32xf32> to vector<16x16xf32>
    %82 = vector.extract_strided_slice %80 {offsets = [0, 16], sizes = [16, 16], strides = [1, 1]} : vector<16x32xf32> to vector<16x16xf32>
    %cst_24 = arith.constant 0.000000e+00 : f32
    %83 = vector.broadcast %cst_24 : f32 to vector<16x16xf32>
    %84 = arith.subf %83, %82 : vector<16x16xf32>
    %85 = tpu.concatenate %84, %81 in 1 : vector<16x16xf32>, vector<16x16xf32> -> vector<16x32xf32>
    %86 = arith.mulf %80, %0 : vector<16x32xf32>
    %87 = arith.mulf %85, %1 : vector<16x32xf32>
    %88 = arith.addf %86, %87 : vector<16x32xf32>
    %cst_25 = arith.constant 0.176776692 : f32
    %89 = vector.broadcast %cst_25 : f32 to vector<16x32xf32>
    %90 = arith.mulf %88, %89 : vector<16x32xf32>
    %91 = vector.extract_strided_slice %5 {offsets = [0, 64], sizes = [16, 32], strides = [1, 1]} : vector<16x128xf32> to vector<16x32xf32>
    %92 = vector.extract_strided_slice %91 {offsets = [0, 0], sizes = [16, 16], strides = [1, 1]} : vector<16x32xf32> to vector<16x16xf32>
    %93 = vector.extract_strided_slice %91 {offsets = [0, 16], sizes = [16, 16], strides = [1, 1]} : vector<16x32xf32> to vector<16x16xf32>
    %cst_26 = arith.constant 0.000000e+00 : f32
    %94 = vector.broadcast %cst_26 : f32 to vector<16x16xf32>
    %95 = arith.subf %94, %93 : vector<16x16xf32>
    %96 = tpu.concatenate %95, %92 in 1 : vector<16x16xf32>, vector<16x16xf32> -> vector<16x32xf32>
    %97 = arith.mulf %91, %0 : vector<16x32xf32>
    %98 = arith.mulf %96, %1 : vector<16x32xf32>
    %99 = arith.addf %97, %98 : vector<16x32xf32>
    %100 = vector.extract_strided_slice %7 {offsets = [0, 64], sizes = [16, 32], strides = [1, 1]} : vector<16x128xf32> to vector<16x32xf32>
    %101 = tpu.transpose %99, [1, 0] : vector<16x32xf32> -> vector<32x16xf32>
    %cst_27 = arith.constant dense<0.000000e+00> : vector<16x16xf32>
    %102 = tpu.matmul %90, %101, %cst_27 {dimension_numbers = #tpu.dot_dimension_numbers<[1], [0], [0], [1], [0, 0, 1, 1], [], []>} : vector<16x32xf32>, vector<32x16xf32>, vector<16x16xf32> -> vector<16x16xf32>
    %c2 = arith.constant 2 : index
    %103 = memref.load %arg4[%c2] : memref<4xf32, #tpu.memory_space<smem>>
    %104 = vector.broadcast %103 : f32 to vector<16x16xf32>
    %105 = arith.addf %102, %104 : vector<16x16xf32>
    %cst_28 = arith.constant dense<0xFF800000> : vector<16xf32>
    %106 = vector.multi_reduction <maximumf>, %105, %cst_28 [1] : vector<16x16xf32> to vector<16xf32>
    %107 = vector.shape_cast %106 : vector<16xf32> to vector<16x1xf32>
    %108 = vector.broadcast %107 : vector<16x1xf32> to vector<16x16xf32>
    %109 = arith.subf %105, %108 : vector<16x16xf32>
    %110 = math.exp %109 : vector<16x16xf32>
    %cst_29 = arith.constant dense<0.000000e+00> : vector<16xf32>
    %111 = vector.multi_reduction <add>, %110, %cst_29 [1] : vector<16x16xf32> to vector<16xf32>
    %112 = vector.shape_cast %111 : vector<16xf32> to vector<16x1xf32>
    %113 = vector.broadcast %112 : vector<16x1xf32> to vector<16x16xf32>
    %114 = arith.divf %110, %113 : vector<16x16xf32>
    %cst_30 = arith.constant dense<0.000000e+00> : vector<16x32xf32>
    %115 = tpu.matmul %114, %100, %cst_30 {dimension_numbers = #tpu.dot_dimension_numbers<[1], [0], [0], [1], [0, 0, 1, 1], [], []>} : vector<16x16xf32>, vector<16x32xf32>, vector<16x32xf32> -> vector<16x32xf32>
    %116 = vector.extract_strided_slice %3 {offsets = [0, 96], sizes = [16, 32], strides = [1, 1]} : vector<16x128xf32> to vector<16x32xf32>
    %117 = vector.extract_strided_slice %116 {offsets = [0, 0], sizes = [16, 16], strides = [1, 1]} : vector<16x32xf32> to vector<16x16xf32>
    %118 = vector.extract_strided_slice %116 {offsets = [0, 16], sizes = [16, 16], strides = [1, 1]} : vector<16x32xf32> to vector<16x16xf32>
    %cst_31 = arith.constant 0.000000e+00 : f32
    %119 = vector.broadcast %cst_31 : f32 to vector<16x16xf32>
    %120 = arith.subf %119, %118 : vector<16x16xf32>
    %121 = tpu.concatenate %120, %117 in 1 : vector<16x16xf32>, vector<16x16xf32> -> vector<16x32xf32>
    %122 = arith.mulf %116, %0 : vector<16x32xf32>
    %123 = arith.mulf %121, %1 : vector<16x32xf32>
    %124 = arith.addf %122, %123 : vector<16x32xf32>
    %cst_32 = arith.constant 0.176776692 : f32
    %125 = vector.broadcast %cst_32 : f32 to vector<16x32xf32>
    %126 = arith.mulf %124, %125 : vector<16x32xf32>
    %127 = vector.extract_strided_slice %5 {offsets = [0, 96], sizes = [16, 32], strides = [1, 1]} : vector<16x128xf32> to vector<16x32xf32>
    %128 = vector.extract_strided_slice %127 {offsets = [0, 0], sizes = [16, 16], strides = [1, 1]} : vector<16x32xf32> to vector<16x16xf32>
    %129 = vector.extract_strided_slice %127 {offsets = [0, 16], sizes = [16, 16], strides = [1, 1]} : vector<16x32xf32> to vector<16x16xf32>
    %cst_33 = arith.constant 0.000000e+00 : f32
    %130 = vector.broadcast %cst_33 : f32 to vector<16x16xf32>
    %131 = arith.subf %130, %129 : vector<16x16xf32>
    %132 = tpu.concatenate %131, %128 in 1 : vector<16x16xf32>, vector<16x16xf32> -> vector<16x32xf32>
    %133 = arith.mulf %127, %0 : vector<16x32xf32>
    %134 = arith.mulf %132, %1 : vector<16x32xf32>
    %135 = arith.addf %133, %134 : vector<16x32xf32>
    %136 = vector.extract_strided_slice %7 {offsets = [0, 96], sizes = [16, 32], strides = [1, 1]} : vector<16x128xf32> to vector<16x32xf32>
    %137 = tpu.transpose %135, [1, 0] : vector<16x32xf32> -> vector<32x16xf32>
    %cst_34 = arith.constant dense<0.000000e+00> : vector<16x16xf32>
    %138 = tpu.matmul %126, %137, %cst_34 {dimension_numbers = #tpu.dot_dimension_numbers<[1], [0], [0], [1], [0, 0, 1, 1], [], []>} : vector<16x32xf32>, vector<32x16xf32>, vector<16x16xf32> -> vector<16x16xf32>
    %c3 = arith.constant 3 : index
    %139 = memref.load %arg4[%c3] : memref<4xf32, #tpu.memory_space<smem>>
    %140 = vector.broadcast %139 : f32 to vector<16x16xf32>
    %141 = arith.addf %138, %140 : vector<16x16xf32>
    %cst_35 = arith.constant dense<0xFF800000> : vector<16xf32>
    %142 = vector.multi_reduction <maximumf>, %141, %cst_35 [1] : vector<16x16xf32> to vector<16xf32>
    %143 = vector.shape_cast %142 : vector<16xf32> to vector<16x1xf32>
    %144 = vector.broadcast %143 : vector<16x1xf32> to vector<16x16xf32>
    %145 = arith.subf %141, %144 : vector<16x16xf32>
    %146 = math.exp %145 : vector<16x16xf32>
    %cst_36 = arith.constant dense<0.000000e+00> : vector<16xf32>
    %147 = vector.multi_reduction <add>, %146, %cst_36 [1] : vector<16x16xf32> to vector<16xf32>
    %148 = vector.shape_cast %147 : vector<16xf32> to vector<16x1xf32>
    %149 = vector.broadcast %148 : vector<16x1xf32> to vector<16x16xf32>
    %150 = arith.divf %146, %149 : vector<16x16xf32>
    %cst_37 = arith.constant dense<0.000000e+00> : vector<16x32xf32>
    %151 = tpu.matmul %150, %136, %cst_37 {dimension_numbers = #tpu.dot_dimension_numbers<[1], [0], [0], [1], [0, 0, 1, 1], [], []>} : vector<16x16xf32>, vector<16x32xf32>, vector<16x32xf32> -> vector<16x32xf32>
    %152 = tpu.concatenate %43, %79, %115, %151 in 1 : vector<16x32xf32>, vector<16x32xf32>, vector<16x32xf32>, vector<16x32xf32> -> vector<16x128xf32>
    %c0_38 = arith.constant 0 : index
    %c0_39 = arith.constant 0 : index
    %c0_40 = arith.constant 0 : index
    %153 = vector.load %arg5[%c0_38, %c0_39, %c0_40] : memref<1x16x128xf32, #tpu.memory_space<vmem>>, vector<1x16x128xf32>
    %154 = vector.shape_cast %153 : vector<1x16x128xf32> to vector<16x128xf32>
    %155 = vector.shape_cast %152 : vector<16x128xf32> to vector<1x16x128xf32>
    tpu.vector_store %arg5[%c0_38, %c0_39, %c0_40], %155 {strides = array<i32>} : memref<1x16x128xf32, #tpu.memory_space<vmem>>, vector<1x16x128xf32>,
    return
  }
  func.func @transform_0(%arg0: i32) -> (i32, i32, i32) {
    %c0_i32 = arith.constant 0 : i32
    %c0_i32_0 = arith.constant 0 : i32
    %c0_i32_1 = arith.constant 0 : i32
    return %arg0, %c0_i32, %c0_i32_0 : i32, i32, i32
  }
  func.func @transform_1(%arg0: i32) -> (i32, i32) {
    %c0_i32 = arith.constant 0 : i32
    %c0_i32_0 = arith.constant 0 : i32
    %c0_i32_1 = arith.constant 0 : i32
    return %c0_i32, %c0_i32_0 : i32, i32
  }
  func.func @transform_2(%arg0: i32) -> (i32, i32) {
    %c0_i32 = arith.constant 0 : i32
    %c0_i32_0 = arith.constant 0 : i32
    %c0_i32_1 = arith.constant 0 : i32
    return %c0_i32, %c0_i32_0 : i32, i32
  }
  func.func @transform_3(%arg0: i32) -> i32 {
    %c0_i32 = arith.constant 0 : i32
    %c0_i32_0 = arith.constant 0 : i32
    return %c0_i32 : i32
  }
  func.func @transform_4(%arg0: i32) -> (i32, i32, i32) {
    %c0_i32 = arith.constant 0 : i32
    %c0_i32_0 = arith.constant 0 : i32
    %c0_i32_1 = arith.constant 0 : i32
    return %arg0, %c0_i32, %c0_i32_0 : i32, i32, i32
  }
}

</mosaic_0001>

<llo_original>
// kernel: health_attention.3
$region0: #{health_attention.3}
  #allocation0 [shape = 'u32[]', space=smem, size = 0x4, offset = 0x4, fixed_abs, tag = 'smem constant byte address 0x4 - core index']
  #allocation1 [shape = 'u32[72,128]{1,0:T(1,128)}', space=vmem, size = 0x9000, scoped, tag = 'internal scratch']
  #allocation2 [shape = 'f32[32,128]{1,0:T(8,128)}', space=vmem, size = 0x4000, scoped, tag = 'scratch operand']
  %s0 = inlined_call_operand.vmem [shape: f32[32,128], index: 0, kind: input, shape index: {}]
  %s1 = inlined_call_operand.vmem [shape: f32[128,384], index: 1, kind: input, shape index: {}]
  %s2 = inlined_call_operand.vmem [shape: f32[32,384], index: 2, kind: output, shape index: {}]
  %s3 = sld [smem:[#allocation0]]
  $region121: #{health_attention.3} parent=0
    _
  %s5 = ssub.s32 1, %s3
  %s6 = scalar_select 0, %s5, %s3
  $region1: #{health_attention.3} parent=0
    #allocation3 [shape = 'u8[131072]{0}', space=vmem, size = 0x20000, scoped, tag = 'input window, operand 1']
    #allocation4 [shape = 'u8[32768]{0}', space=vmem, size = 0x8000, scoped, tag = 'output window, operand 0']
    loop: start=0, step=1, limit=5
    $region2: #{health_attention.3} parent=1 // loop_pre_header
      _
    $region3: #{health_attention.3} parent=1 // loop_header
      %s8 = sphi 0, %s12
      %p9 = scmp.ge.s32.totalorder %s8, 5
      %s15 = sphi 0, %s34
      %s16 = sphi 0, %s30
      %s17 = sphi 0, %s26
      %s18 = sphi 0, %s15
      %s19 = sphi 0, %s16
      %s20 = sphi 0, %s17
      %s21 = sphi 0, %s18
      %s22 = sphi 0, %s19
      %s23 = sphi 0, %s20
      %s39 = sphi 0, %s41
      %s42 = sphi 0, %s39
      %s43 = sphi 0, %s42
      %s59 = sphi 0, %s43
      %s67 = sphi 0, %s69
      %s70 = sphi 0, %s67
      %s71 = sphi 0, %s70
      %s87 = sphi 0, %s71
      %s95 = sphi 0, %s97
      %s98 = sphi 0, %s95
      %s99 = sphi 0, %s98
      %s115 = sphi 0, %s99
    $region4: #{health_attention.3} parent=1 // loop_header_branch
      %11 = sbr.rel (%p9) target = $region8
    $region5: #{health_attention.3} parent=1 // loop_body
      %s13 = ssub.s32 %s8, 1
      %s14 = ssub.s32 %s8, 2
      %s24 = sadd.s32 1, %s17
      %p25 = scmp.ge.s32.totalorder %s24, 1
      %s26 = scalar_select %p25, 0, %s24
      %s27 = sadd.s32 1, %s16
      %s28 = scalar_select %p25, %s27, %s16
      %p29 = scmp.ge.s32.totalorder %s28, 3
      %s30 = scalar_select %p29, 0, %s28
      %s31 = sadd.s32 1, %s15
      %s32 = scalar_select %p29, %s31, %s15
      %p33 = scmp.ge.s32.totalorder %s32, 1
      %s34 = scalar_select %p33, 0, %s32
      %s35 = ssub.s32 %s15, %s34
      %s36 = ssub.s32 %s17, %s26
      %s37 = sor.u32 %s35, %s36
      %p38 = scmp.eq.s32.totalorder %s37, 0
      %s40 = sadd.s32 %s39, 1
      %s41 = scalar_select %p38, %s39, %s40
      %p44 = pneg %p38
      %p45 = scmp.eq.s32.totalorder %s8, 2
      %p46 = por %p44, %p45
      %p47 = scmp.ne.s32.totalorder %s39, %s42
      %p48 = scmp.eq.s32.totalorder %s8, 0
      %p49 = por %p47, %p48
      %p50 = scmp.ne.s32.totalorder %s39, %s42
      %p51 = scmp.eq.s32.totalorder %s13, 2
      %p52 = por %p50, %p51
      %p53 = scmp.ne.s32.totalorder %s42, %s43
      %p54 = scmp.eq.s32.totalorder %s13, 0
      %p55 = por %p53, %p54
      %p56 = scmp.ne.s32.totalorder %s42, %s43
      %p57 = scmp.eq.s32.totalorder %s14, 2
      %p58 = por %p56, %p57
      %p60 = scmp.ne.s32.totalorder %s43, %s59
      %p61 = scmp.eq.s32.totalorder %s14, 0
      %p62 = por %p60, %p61
      %s63 = ssub.s32 %s17, %s26
      %s64 = ssub.s32 %s16, %s30
      %s65 = sor.u32 %s63, %s64
      %p66 = scmp.eq.s32.totalorder %s65, 0
      %s68 = sadd.s32 %s67, 1
      %s69 = scalar_select %p66, %s67, %s68
      %p72 = pneg %p66
      %p73 = scmp.eq.s32.totalorder %s8, 2
      %p74 = por %p72, %p73
      %p75 = scmp.ne.s32.totalorder %s67, %s70
      %p76 = scmp.eq.s32.totalorder %s8, 0
      %p77 = por %p75, %p76
      %p78 = scmp.ne.s32.totalorder %s67, %s70
      %p79 = scmp.eq.s32.totalorder %s13, 2
      %p80 = por %p78, %p79
      %p81 = scmp.ne.s32.totalorder %s70, %s71
      %p82 = scmp.eq.s32.totalorder %s13, 0
      %p83 = por %p81, %p82
      %p84 = scmp.ne.s32.totalorder %s70, %s71
      %p85 = scmp.eq.s32.totalorder %s14, 2
      %p86 = por %p84, %p85
      %p88 = scmp.ne.s32.totalorder %s71, %s87
      %p89 = scmp.eq.s32.totalorder %s14, 0
      %p90 = por %p88, %p89
      %s91 = ssub.s32 %s15, %s34
      %s92 = ssub.s32 %s16, %s30
      %s93 = sor.u32 %s91, %s92
      %p94 = scmp.eq.s32.totalorder %s93, 0
      %s96 = sadd.s32 %s95, 1
      %s97 = scalar_select %p94, %s95, %s96
      %p100 = pneg %p94
      %p101 = scmp.eq.s32.totalorder %s8, 2
      %p102 = por %p100, %p101
      %p103 = scmp.ne.s32.totalorder %s95, %s98
      %p104 = scmp.eq.s32.totalorder %s8, 0
      %p105 = por %p103, %p104
      %p106 = scmp.ne.s32.totalorder %s95, %s98
      %p107 = scmp.eq.s32.totalorder %s13, 2
      %p108 = por %p106, %p107
      %p109 = scmp.ne.s32.totalorder %s98, %s99
      %p110 = scmp.eq.s32.totalorder %s13, 0
      %p111 = por %p109, %p110
      %p112 = scmp.ne.s32.totalorder %s98, %s99
      %p113 = scmp.eq.s32.totalorder %s14, 2
      %p114 = por %p112, %p113
      %p116 = scmp.ne.s32.totalorder %s99, %s115
      %p117 = scmp.eq.s32.totalorder %s14, 0
      %p118 = por %p116, %p117
      %p119 = scmp.le.s32.totalorder 1, %s8
      %p120 = scmp.lt.s32.totalorder %s8, 4
      %p121 = pnand %p119, %p120
      %p122 = pneg %p121
      // Predicated region
      $region9: #{health_attention.3} parent=5 // pred_check
        _
      $region10: #{health_attention.3} parent=5 // pred_check_branch
        %124 = sbr.rel (%p121) target = $region12
      $region11: #{health_attention.3} parent=5 // pred_region
        %s125 = ssub.s32 %s8, 1
        // Predicated region
        $region13: #{health_attention.3} parent=11 // pred_check
          %p126 = pneg %p55
        $region14: #{health_attention.3} parent=11 // pred_check_branch
          %128 = sbr.rel (%p126) target = $region16
        $region15: #{health_attention.3} parent=11 // pred_region
          %s129 = smul.u32 4, %s18
          %p130 = scmp.lt.s32.totalorder %s129, 3
          %s131 = scalar_select %p130, %s129, 3
          %p132 = scmp.lt.s32.totalorder %s20, 0
          %s133 = scalar_select %p132, %s20, 0
          %s134 = sadd.s32 %s133, %s131
          %s135 = smul.addr %s134, 8
          %s136 = scalar_lea.vmem %s0, %s135
          %s137 = smul.u32 4, %s18
        $region16: #{health_attention.3} parent=11 // pred_fallthru
          _
      $region12: #{health_attention.3} parent=5 // pred_fallthru
        _
      %p138 = scmp.lt.s32.totalorder %s8, 3
      // Predicated region
      $region17: #{health_attention.3} parent=5 // pred_check
        %p139 = pneg %p138
      $region18: #{health_attention.3} parent=5 // pred_check_branch
        %141 = sbr.rel (%p139) target = $region20
      $region19: #{health_attention.3} parent=5 // pred_region
        // Predicated region
        $region21: #{health_attention.3} parent=19 // pred_check
          %p142 = pneg %p77
        $region22: #{health_attention.3} parent=19 // pred_check_branch
          %144 = sbr.rel (%p142) target = $region24
        $region23: #{health_attention.3} parent=19 // pred_region
          %s145 = sand.u32 %s67, 1
          %s146 = sand.u32 %s67, 1
          %s147 = smul.addr %s146, 128
          %s148 = scalar_lea.vmem [#allocation3], %s147
          %s149 = smul.u32 16, %s17
          %s150 = smul.addr %s149, 3
          %s151 = sadd.s32 %s16, %s150
          %s152 = smul.addr %s151, 8
          %s153 = scalar_lea.vmem %s1, %s152
          // Predicated region
          $region25: #{health_attention.3} parent=23 // pred_check
            _
          $region26: #{health_attention.3} parent=23 // pred_check_branch
            %155 = sbr.rel (0) target = $region28
          $region27: #{health_attention.3} parent=23 // pred_region
            // Predicated region
            $region29: #{health_attention.3} parent=27 // pred_check
              _
            $region30: #{health_attention.3} parent=27 // pred_check_branch
              %157 = sbr.rel (0) target = $region32
            $region31: #{health_attention.3} parent=27 // pred_region
              // Predicated region
              $region44: #{health_attention.3} parent=31 // pred_check
                _
              $region45: #{health_attention.3} parent=31 // pred_check_branch
                %203 = sbr.rel (0) target = $region47
              $region46: #{health_attention.3} parent=31 // pred_region
                loop: start=0, step=1, limit=1
                $region48: #{health_attention.3} parent=46 // loop_pre_header
                  _
                $region49: #{health_attention.3} parent=46 // loop_header
                  %s205 = sphi 0, %s209
                  %p206 = scmp.ge.s32.totalorder %s205, 1
                  %s210 = sphi %s153, %s153
                  %s211 = sphi %s148, %s148
                $region50: #{health_attention.3} parent=46 // loop_header_branch
                  %208 = sbr.rel (%p206) target = $region54
                $region51: #{health_attention.3} parent=46 // loop_body
                  %v212 = vld [vmem:[%s210] sm:$0xff]
                  %213 = vst [vmem:[%s211] sm:$0xff] %v212
                  %v214 = vld [vmem:[%s210 + $0x18] sm:$0xff]
                  %215 = vst [vmem:[%s211 + $0x8] sm:$0xff] %v214
                  %v216 = vld [vmem:[%s210 + $0x30] sm:$0xff]
                  %217 = vst [vmem:[%s211 + $0x10] sm:$0xff] %v216
                  %v218 = vld [vmem:[%s210 + $0x48] sm:$0xff]
                  %219 = vst [vmem:[%s211 + $0x18] sm:$0xff] %v218
                  %v220 = vld [vmem:[%s210 + $0x60] sm:$0xff]
                  %221 = vst [vmem:[%s211 + $0x20] sm:$0xff] %v220
                  %v222 = vld [vmem:[%s210 + $0x78] sm:$0xff]
                  %223 = vst [vmem:[%s211 + $0x28] sm:$0xff] %v222
                  %v224 = vld [vmem:[%s210 + $0x90] sm:$0xff]
                  %225 = vst [vmem:[%s211 + $0x30] sm:$0xff] %v224
                  %v226 = vld [vmem:[%s210 + $0xa8] sm:$0xff]
                  %227 = vst [vmem:[%s211 + $0x38] sm:$0xff] %v226
                  %v228 = vld [vmem:[%s210 + $0xc0] sm:$0xff]
                  %229 = vst [vmem:[%s211 + $0x40] sm:$0xff] %v228
                  %v230 = vld [vmem:[%s210 + $0xd8] sm:$0xff]
                  %231 = vst [vmem:[%s211 + $0x48] sm:$0xff] %v230
                  %v232 = vld [vmem:[%s210 + $0xf0] sm:$0xff]
                  %233 = vst [vmem:[%s211 + $0x50] sm:$0xff] %v232
                  %v234 = vld [vmem:[%s210 + $0x108] sm:$0xff]
                  %235 = vst [vmem:[%s211 + $0x58] sm:$0xff] %v234
                  %v236 = vld [vmem:[%s210 + $0x120] sm:$0xff]
                  %237 = vst [vmem:[%s211 + $0x60] sm:$0xff] %v236
                  %v238 = vld [vmem:[%s210 + $0x138] sm:$0xff]
                  %239 = vst [vmem:[%s211 + $0x68] sm:$0xff] %v238
                  %v240 = vld [vmem:[%s210 + $0x150] sm:$0xff]
                  %241 = vst [vmem:[%s211 + $0x70] sm:$0xff] %v240
                  %v242 = vld [vmem:[%s210 + $0x168] sm:$0xff]
                  %243 = vst [vmem:[%s211 + $0x78] sm:$0xff] %v242
                $region52: #{health_attention.3} parent=46 // loop_footer
                  %s209 = sadd.s32 1, %s205
                $region53: #{health_attention.3} parent=46 // loop_footer_branch
                  %204 = sbr.rel target = $region49
                $region54: #{health_attention.3} parent=46 // loop_exit
                  _
              $region47: #{health_attention.3} parent=31 // pred_fallthru
                _
              // Predicated region
              $region55: #{health_attention.3} parent=31 // pred_check
                _
              $region56: #{health_attention.3} parent=31 // pred_check_branch
                %245 = sbr.rel target = $region58
              $region57: #{health_attention.3} parent=31 // pred_region
                _
              $region58: #{health_attention.3} parent=31 // pred_fallthru
                _
            $region32: #{health_attention.3} parent=27 // pred_fallthru
              _
            // Predicated region
            $region33: #{health_attention.3} parent=27 // pred_check
              _
            $region34: #{health_attention.3} parent=27 // pred_check_branch
              %159 = sbr.rel target = $region36
            $region35: #{health_attention.3} parent=27 // pred_region
              %s161 = ssub.s32 256, 1
              loop: start=0, step=1, limit=1
              $region37: #{health_attention.3} parent=35 // loop_pre_header
                _
              $region38: #{health_attention.3} parent=35 // loop_header
                %s163 = sphi 0, %s167
                %p164 = scmp.ge.s32.totalorder %s163, 1
                %s168 = sphi %s153, %s153
                %s169 = sphi %s148, %s148
              $region39: #{health_attention.3} parent=35 // loop_header_branch
                %166 = sbr.rel (%p164) target = $region43
              $region40: #{health_attention.3} parent=35 // loop_body
                %v170 = vld [vmem:[%s168] sm:%s161]
                %171 = vst [vmem:[%s169] sm:%s161] %v170
                %v172 = vld [vmem:[%s168 + $0x18] sm:%s161]
                %173 = vst [vmem:[%s169 + $0x8] sm:%s161] %v172
                %v174 = vld [vmem:[%s168 + $0x30] sm:%s161]
                %175 = vst [vmem:[%s169 + $0x10] sm:%s161] %v174
                %v176 = vld [vmem:[%s168 + $0x48] sm:%s161]
                %177 = vst [vmem:[%s169 + $0x18] sm:%s161] %v176
                %v178 = vld [vmem:[%s168 + $0x60] sm:%s161]
                %179 = vst [vmem:[%s169 + $0x20] sm:%s161] %v178
                %v180 = vld [vmem:[%s168 + $0x78] sm:%s161]
                %181 = vst [vmem:[%s169 + $0x28] sm:%s161] %v180
                %v182 = vld [vmem:[%s168 + $0x90] sm:%s161]
                %183 = vst [vmem:[%s169 + $0x30] sm:%s161] %v182
                %v184 = vld [vmem:[%s168 + $0xa8] sm:%s161]
                %185 = vst [vmem:[%s169 + $0x38] sm:%s161] %v184
                %v186 = vld [vmem:[%s168 + $0xc0] sm:%s161]
                %187 = vst [vmem:[%s169 + $0x40] sm:%s161] %v186
                %v188 = vld [vmem:[%s168 + $0xd8] sm:%s161]
                %189 = vst [vmem:[%s169 + $0x48] sm:%s161] %v188
                %v190 = vld [vmem:[%s168 + $0xf0] sm:%s161]
                %191 = vst [vmem:[%s169 + $0x50] sm:%s161] %v190
                %v192 = vld [vmem:[%s168 + $0x108] sm:%s161]
                %193 = vst [vmem:[%s169 + $0x58] sm:%s161] %v192
                %v194 = vld [vmem:[%s168 + $0x120] sm:%s161]
                %195 = vst [vmem:[%s169 + $0x60] sm:%s161] %v194
                %v196 = vld [vmem:[%s168 + $0x138] sm:%s161]
                %197 = vst [vmem:[%s169 + $0x68] sm:%s161] %v196
                %v198 = vld [vmem:[%s168 + $0x150] sm:%s161]
                %199 = vst [vmem:[%s169 + $0x70] sm:%s161] %v198
                %v200 = vld [vmem:[%s168 + $0x168] sm:%s161]
                %201 = vst [vmem:[%s169 + $0x78] sm:%s161] %v200
              $region41: #{health_attention.3} parent=35 // loop_footer
                %s167 = sadd.s32 1, %s163
              $region42: #{health_attention.3} parent=35 // loop_footer_branch
                %162 = sbr.rel target = $region38
              $region43: #{health_attention.3} parent=35 // loop_exit
                _
            $region36: #{health_attention.3} parent=27 // pred_fallthru
              _
          $region28: #{health_attention.3} parent=23 // pred_fallthru
            _
          %246 = vnop
        $region24: #{health_attention.3} parent=19 // pred_fallthru
          _
      $region20: #{health_attention.3} parent=5 // pred_fallthru
        _
      %p247 = scmp.le.s32.totalorder 1, %s8
      %p248 = scmp.lt.s32.totalorder %s8, 4
      %p249 = pnand %p247, %p248
      %p250 = pneg %p249
      // Predicated region
      $region59: #{health_attention.3} parent=5 // pred_check
        _
      $region60: #{health_attention.3} parent=5 // pred_check_branch
        %252 = sbr.rel (%p249) target = $region62
      $region61: #{health_attention.3} parent=5 // pred_region
        %s253 = ssub.s32 %s8, 1
        %s254 = sand.u32 %s70, 1
        %s255 = sand.u32 %s70, 1
        %s256 = smul.addr %s255, 128
        %s257 = scalar_lea.vmem [#allocation3], %s256
        // Predicated region
        $region63: #{health_attention.3} parent=61 // pred_check
          %p258 = pneg %p83
        $region64: #{health_attention.3} parent=61 // pred_check_branch
          %260 = sbr.rel (%p258) target = $region66
        $region65: #{health_attention.3} parent=61 // pred_region
          _
        $region66: #{health_attention.3} parent=61 // pred_fallthru
          _
        %s261 = smul.u32 4, %s18
        %p262 = scmp.lt.s32.totalorder %s261, 3
        %s263 = scalar_select %p262, %s261, 3
        %p264 = scmp.lt.s32.totalorder %s20, 0
        %s265 = scalar_select %p264, %s20, 0
        %s266 = sadd.s32 %s265, %s263
        %s267 = smul.addr %s266, 8
        %s268 = scalar_lea.vmem %s0, %s267
        %p269 = pneg %p55
        %p270 = pneg %p52
        %s271 = sand.u32 %s70, 1
        %s272 = sand.u32 %s70, 1
        %s273 = smul.addr %s272, 128
        %s274 = scalar_lea.vmem [#allocation3], %s273
        %p275 = pneg %p83
        %p276 = pneg %p80
        %p277 = pneg %p111
        %p278 = pneg %p108
        %s279 = sand.u32 %s98, 1
        %s280 = sand.u32 %s98, 1
        %s281 = smul.addr %s280, 32
        %s282 = scalar_lea.vmem [#allocation4], %s281
        %s283 = smul.u32 4, %s18
        %p284 = scmp.lt.s32.totalorder %s283, 3
        %s285 = scalar_select %p284, %s283, 3
        %p286 = scmp.lt.s32.totalorder %s20, 0
        %s287 = scalar_select %p286, %s20, 0
        %s288 = sadd.s32 %s287, %s285
        %s289 = smul.addr %s288, 8
        %s290 = scalar_lea.vmem %s0, %s289
        %s291 = smul.u32 4, %s18
        %s292 = smul.u32 16, %s20
        %s293 = smul.u32 4, %s18
        %p294 = scmp.eq.s32.totalorder %s20, 0
        // Predicated region
        $region67: #{health_attention.3} parent=61 // pred_check
          %p295 = pneg %p294
        $region68: #{health_attention.3} parent=61 // pred_check_branch
          %297 = sbr.rel (%p295) target = $region70
        $region69: #{health_attention.3} parent=61 // pred_region
          %298 = vst [vmem:[#allocation2] sm:$0xff] 0.0
          %299 = vst [vmem:[#allocation2 + $0x8] sm:$0xff] 0.0
          %300 = vst [vmem:[#allocation2 + $0x10] sm:$0xff] 0.0
          %301 = vst [vmem:[#allocation2 + $0x18] sm:$0xff] 0.0
        $region70: #{health_attention.3} parent=61 // pred_fallthru
          _
        %v302 = vld [vmem:[#allocation2] sm:$0xff]
        %v303 = vld [vmem:[#allocation2 + $0x8] sm:$0xff]
        %v304 = vld [vmem:[#allocation2 + $0x10] sm:$0xff]
        %v305 = vld [vmem:[#allocation2 + $0x18] sm:$0xff]
        %v306 = vld [vmem:[%s290] sm:$0xff]
        %v307 = vld [vmem:[%s290 + $0x8] sm:$0xff]
        %v308 = vld [vmem:[%s290 + $0x10] sm:$0xff]
        %v309 = vld [vmem:[%s290 + $0x18] sm:$0xff]
        %v310 = vld [vmem:[%s257] sm:$0xff]
        %v311 = vld [vmem:[%s257 + $0x8] sm:$0xff]
        %v312 = vld [vmem:[%s257 + $0x10] sm:$0xff]
        %v313 = vld [vmem:[%s257 + $0x18] sm:$0xff]
        %v314 = vld [vmem:[%s257 + $0x20] sm:$0xff]
        %v315 = vld [vmem:[%s257 + $0x28] sm:$0xff]
        %v316 = vld [vmem:[%s257 + $0x30] sm:$0xff]
        %v317 = vld [vmem:[%s257 + $0x38] sm:$0xff]
        %v318 = vld [vmem:[%s257 + $0x40] sm:$0xff]
        %v319 = vld [vmem:[%s257 + $0x48] sm:$0xff]
        %v320 = vld [vmem:[%s257 + $0x50] sm:$0xff]
        %v321 = vld [vmem:[%s257 + $0x58] sm:$0xff]
        %v322 = vld [vmem:[%s257 + $0x60] sm:$0xff]
        %v323 = vld [vmem:[%s257 + $0x68] sm:$0xff]
        %v324 = vld [vmem:[%s257 + $0x70] sm:$0xff]
        %v325 = vld [vmem:[%s257 + $0x78] sm:$0xff]
        %326 = vmatpush.msra.mxu0 %v325
        %327 = vmatpush.msra.mxu0 %v324
        %328 = vmatpush.msra.mxu0 %v323
        %329 = vmatpush.msra.mxu0 %v322
        %330 = vmatpush.msra.mxu0 %v321
        %331 = vmatpush.msra.mxu0 %v320
        %332 = vmatpush.msra.mxu0 %v319
        %333 = vmatpush.msra.mxu0 %v318
        %334 = vmatpush.msra.mxu0 %v317
        %335 = vmatpush.msra.mxu0 %v316
        %336 = vmatpush.msra.mxu0 %v315
        %337 = vmatpush.msra.mxu0 %v314
        %338 = vmatpush.msra.mxu0 %v313
        %339 = vmatpush.msra.mxu0 %v312
        %340 = vmatpush.msra.mxu0 %v311
        %341 = vmatpush.msra.mxu0 %v310
        %342 = vmatmul.f32.gmra.mxu0 %v306
        %v343 = vpop.f32.mrf.mxu0
        %v344 = vadd.f32 0.0, %v343
        %345 = vmatmul.f32.gmra.mxu0 %v307
        %v346 = vpop.f32.mrf.mxu0
        %v347 = vadd.f32 0.0, %v346
        %348 = vmatmul.f32.gmra.mxu0 %v308
        %v349 = vpop.f32.mrf.mxu0
        %v350 = vadd.f32 0.0, %v349
        %351 = vmatmul.f32.gmra.mxu0 %v309
        %v352 = vpop.f32.mrf.mxu0
        %v353 = vadd.f32 0.0, %v352
        %354 = vdwg.mxu0
        %v355 = vadd.f32 %v302, %v344
        %v356 = vadd.f32 %v303, %v347
        %v357 = vadd.f32 %v304, %v350
        %v358 = vadd.f32 %v305, %v353
        %359 = vst [vmem:[#allocation2] sm:$0xff] %v355
        %360 = vst [vmem:[#allocation2 + $0x8] sm:$0xff] %v356
        %361 = vst [vmem:[#allocation2 + $0x10] sm:$0xff] %v357
        %362 = vst [vmem:[#allocation2 + $0x18] sm:$0xff] %v358
        // Predicated region
        $region71: #{health_attention.3} parent=61 // pred_check
          %p363 = pneg %p294
        $region72: #{health_attention.3} parent=61 // pred_check_branch
          %365 = sbr.rel (%p363) target = $region74
        $region73: #{health_attention.3} parent=61 // pred_region
          %v366 = vld [vmem:[#allocation2] sm:$0xff]
          %v367 = vld [vmem:[#allocation2 + $0x8] sm:$0xff]
          %v368 = vld [vmem:[#allocation2 + $0x10] sm:$0xff]
          %v369 = vld [vmem:[#allocation2 + $0x18] sm:$0xff]
          %370 = vst [vmem:[%s282] sm:$0xff] %v366
          %371 = vst [vmem:[%s282 + $0x8] sm:$0xff] %v367
          %372 = vst [vmem:[%s282 + $0x10] sm:$0xff] %v368
          %373 = vst [vmem:[%s282 + $0x18] sm:$0xff] %v369
        $region74: #{health_attention.3} parent=61 // pred_fallthru
          _
        %s374 = sand.u32 %s98, 1
        %s375 = sand.u32 %s98, 1
        %s376 = smul.addr %s375, 32
        %s377 = scalar_lea.vmem [#allocation4], %s376
        // Predicated region
        $region75: #{health_attention.3} parent=61 // pred_check
          %p378 = pneg %p108
        $region76: #{health_attention.3} parent=61 // pred_check_branch
          %380 = sbr.rel (%p378) target = $region78
        $region77: #{health_attention.3} parent=61 // pred_region
          %s381 = smul.u32 4, %s18
          %s382 = smul.addr %s381, 3
          %s383 = sadd.s32 %s19, %s382
          %s384 = smul.addr %s383, 8
          %s385 = scalar_lea.vmem %s2, %s384
          // Predicated region
          $region79: #{health_attention.3} parent=77 // pred_check
            _
          $region80: #{health_attention.3} parent=77 // pred_check_branch
            %387 = sbr.rel (0) target = $region82
          $region81: #{health_attention.3} parent=77 // pred_region
            // Predicated region
            $region83: #{health_attention.3} parent=81 // pred_check
              _
            $region84: #{health_attention.3} parent=81 // pred_check_branch
              %389 = sbr.rel (0) target = $region86
            $region85: #{health_attention.3} parent=81 // pred_region
              // Predicated region
              $region98: #{health_attention.3} parent=85 // pred_check
                _
              $region99: #{health_attention.3} parent=85 // pred_check_branch
                %411 = sbr.rel (0) target = $region101
              $region100: #{health_attention.3} parent=85 // pred_region
                loop: start=0, step=1, limit=1
                $region102: #{health_attention.3} parent=100 // loop_pre_header
                  _
                $region103: #{health_attention.3} parent=100 // loop_header
                  %s413 = sphi 0, %s417
                  %p414 = scmp.ge.s32.totalorder %s413, 1
                  %s418 = sphi %s377, %s377
                  %s419 = sphi %s385, %s385
                $region104: #{health_attention.3} parent=100 // loop_header_branch
                  %416 = sbr.rel (%p414) target = $region108
                $region105: #{health_attention.3} parent=100 // loop_body
                  %v420 = vld [vmem:[%s418] sm:$0xff]
                  %421 = vst [vmem:[%s419] sm:$0xff] %v420
                  %v422 = vld [vmem:[%s418 + $0x8] sm:$0xff]
                  %423 = vst [vmem:[%s419 + $0x18] sm:$0xff] %v422
                  %v424 = vld [vmem:[%s418 + $0x10] sm:$0xff]
                  %425 = vst [vmem:[%s419 + $0x30] sm:$0xff] %v424
                  %v426 = vld [vmem:[%s418 + $0x18] sm:$0xff]
                  %427 = vst [vmem:[%s419 + $0x48] sm:$0xff] %v426
                $region106: #{health_attention.3} parent=100 // loop_footer
                  %s417 = sadd.s32 1, %s413
                $region107: #{health_attention.3} parent=100 // loop_footer_branch
                  %412 = sbr.rel target = $region103
                $region108: #{health_attention.3} parent=100 // loop_exit
                  _
              $region101: #{health_attention.3} parent=85 // pred_fallthru
                _
              // Predicated region
              $region109: #{health_attention.3} parent=85 // pred_check
                _
              $region110: #{health_attention.3} parent=85 // pred_check_branch
                %429 = sbr.rel target = $region112
              $region111: #{health_attention.3} parent=85 // pred_region
                _
              $region112: #{health_attention.3} parent=85 // pred_fallthru
                _
            $region86: #{health_attention.3} parent=81 // pred_fallthru
              _
            // Predicated region
            $region87: #{health_attention.3} parent=81 // pred_check
              _
            $region88: #{health_attention.3} parent=81 // pred_check_branch
              %391 = sbr.rel target = $region90
            $region89: #{health_attention.3} parent=81 // pred_region
              %s393 = ssub.s32 256, 1
              loop: start=0, step=1, limit=1
              $region91: #{health_attention.3} parent=89 // loop_pre_header
                _
              $region92: #{health_attention.3} parent=89 // loop_header
                %s395 = sphi 0, %s399
                %p396 = scmp.ge.s32.totalorder %s395, 1
                %s400 = sphi %s377, %s377
                %s401 = sphi %s385, %s385
              $region93: #{health_attention.3} parent=89 // loop_header_branch
                %398 = sbr.rel (%p396) target = $region97
              $region94: #{health_attention.3} parent=89 // loop_body
                %v402 = vld [vmem:[%s400] sm:%s393]
                %403 = vst [vmem:[%s401] sm:%s393] %v402
                %v404 = vld [vmem:[%s400 + $0x8] sm:%s393]
                %405 = vst [vmem:[%s401 + $0x18] sm:%s393] %v404
                %v406 = vld [vmem:[%s400 + $0x10] sm:%s393]
                %407 = vst [vmem:[%s401 + $0x30] sm:%s393] %v406
                %v408 = vld [vmem:[%s400 + $0x18] sm:%s393]
                %409 = vst [vmem:[%s401 + $0x48] sm:%s393] %v408
              $region95: #{health_attention.3} parent=89 // loop_footer
                %s399 = sadd.s32 1, %s395
              $region96: #{health_attention.3} parent=89 // loop_footer_branch
                %394 = sbr.rel target = $region92
              $region97: #{health_attention.3} parent=89 // loop_exit
                _
            $region90: #{health_attention.3} parent=81 // pred_fallthru
              _
          $region82: #{health_attention.3} parent=77 // pred_fallthru
            _
          %430 = vnop
        $region78: #{health_attention.3} parent=61 // pred_fallthru
          _
      $region62: #{health_attention.3} parent=5 // pred_fallthru
        _
      %p431 = scmp.le.s32.totalorder 2, %s8
      // Predicated region
      $region113: #{health_attention.3} parent=5 // pred_check
        %p432 = pneg %p431
      $region114: #{health_attention.3} parent=5 // pred_check_branch
        %434 = sbr.rel (%p432) target = $region116
      $region115: #{health_attention.3} parent=5 // pred_region
        %s435 = ssub.s32 %s8, 2
        // Predicated region
        $region117: #{health_attention.3} parent=115 // pred_check
          %p436 = pneg %p114
        $region118: #{health_attention.3} parent=115 // pred_check_branch
          %438 = sbr.rel (%p436) target = $region120
        $region119: #{health_attention.3} parent=115 // pred_region
          %s439 = sand.u32 %s99, 1
          %s440 = sand.u32 %s99, 1
          %s441 = smul.addr %s440, 32
          %s442 = scalar_lea.vmem [#allocation4], %s441
        $region120: #{health_attention.3} parent=115 // pred_fallthru
          _
      $region116: #{health_attention.3} parent=5 // pred_fallthru
        _
    $region6: #{health_attention.3} parent=1 // loop_footer
      %s12 = sadd.s32 1, %s8
    $region7: #{health_attention.3} parent=1 // loop_footer_branch
      %7 = sbr.rel target = $region3
    $region8: #{health_attention.3} parent=1 // loop_exit
      _

// kernel: health_attention.5
$region0: #{health_attention.5}
  #allocation0 [shape = 'u32[]', space=smem, size = 0x4, offset = 0x4, fixed_abs, tag = 'smem constant byte address 0x4 - core index']
  #allocation1 [shape = 'u32[72,128]{1,0:T(1,128)}', space=vmem, size = 0x9000, scoped, tag = 'internal scratch']
  #allocation2 [shape = 'f32[32,128]{1,0:T(8,128)}', space=vmem, size = 0x4000, scoped, tag = 'scratch operand']
  %s0 = inlined_call_operand.vmem [shape: f32[32,128], index: 0, kind: input, shape index: {}]
  %s1 = inlined_call_operand.vmem [shape: f32[128,128], index: 1, kind: input, shape index: {}]
  %s2 = inlined_call_operand.hbm [shape: f32[32,128], index: 2, kind: output, shape index: {}]
  %s3 = sld [smem:[#allocation0]]
  $region26: #{health_attention.5} parent=0
    _
  %s5 = ssub.s32 1, %s3
  %s6 = scalar_select 0, %s5, %s3
  $region1: #{health_attention.5} parent=0
    #allocation3 [shape = 'u8[16384]{0}', space=vmem, size = 0x4000, scoped, tag = 'output window, operand 0, single buffered']
    #allocation4 [shape = 's32[1]{0}', space=sflag, size = 0x4, scoped, tag = 'scoped memory for health_attention.5']
    %7 = vsyncpa [#allocation4], 0
    // Predicated region
    $region2: #{health_attention.5} parent=1 // pred_check
      _
    $region3: #{health_attention.5} parent=1 // pred_check_branch
      %9 = sbr.rel (0) target = $region5
    $region4: #{health_attention.5} parent=1 // pred_region
      _
    $region5: #{health_attention.5} parent=1 // pred_fallthru
      _
    // Predicated region
    $region6: #{health_attention.5} parent=1 // pred_check
      _
    $region7: #{health_attention.5} parent=1 // pred_check_branch
      %11 = sbr.rel (0) target = $region9
    $region8: #{health_attention.5} parent=1 // pred_region
      _
    $region9: #{health_attention.5} parent=1 // pred_fallthru
      _
    %p12 = scmp.eq.s32.totalorder 0, 0
    // Predicated region
    $region10: #{health_attention.5} parent=1 // pred_check
      %p13 = pneg %p12
    $region11: #{health_attention.5} parent=1 // pred_check_branch
      %15 = sbr.rel (%p13) target = $region13
    $region12: #{health_attention.5} parent=1 // pred_region
      %16 = vst [vmem:[#allocation2] sm:$0xff] 0.0
      %17 = vst [vmem:[#allocation2 + $0x8] sm:$0xff] 0.0
      %18 = vst [vmem:[#allocation2 + $0x10] sm:$0xff] 0.0
      %19 = vst [vmem:[#allocation2 + $0x18] sm:$0xff] 0.0
    $region13: #{health_attention.5} parent=1 // pred_fallthru
      _
    %v20 = vld [vmem:[#allocation2] sm:$0xff]
    %v21 = vld [vmem:[#allocation2 + $0x8] sm:$0xff]
    %v22 = vld [vmem:[#allocation2 + $0x10] sm:$0xff]
    %v23 = vld [vmem:[#allocation2 + $0x18] sm:$0xff]
    %v24 = vld [vmem:[%s0] sm:$0xff]
    %v25 = vld [vmem:[%s0 + $0x8] sm:$0xff]
    %v26 = vld [vmem:[%s0 + $0x10] sm:$0xff]
    %v27 = vld [vmem:[%s0 + $0x18] sm:$0xff]
    %v28 = vld [vmem:[%s1] sm:$0xff]
    %v29 = vld [vmem:[%s1 + $0x8] sm:$0xff]
    %v30 = vld [vmem:[%s1 + $0x10] sm:$0xff]
    %v31 = vld [vmem:[%s1 + $0x18] sm:$0xff]
    %v32 = vld [vmem:[%s1 + $0x20] sm:$0xff]
    %v33 = vld [vmem:[%s1 + $0x28] sm:$0xff]
    %v34 = vld [vmem:[%s1 + $0x30] sm:$0xff]
    %v35 = vld [vmem:[%s1 + $0x38] sm:$0xff]
    %v36 = vld [vmem:[%s1 + $0x40] sm:$0xff]
    %v37 = vld [vmem:[%s1 + $0x48] sm:$0xff]
    %v38 = vld [vmem:[%s1 + $0x50] sm:$0xff]
    %v39 = vld [vmem:[%s1 + $0x58] sm:$0xff]
    %v40 = vld [vmem:[%s1 + $0x60] sm:$0xff]
    %v41 = vld [vmem:[%s1 + $0x68] sm:$0xff]
    %v42 = vld [vmem:[%s1 + $0x70] sm:$0xff]
    %v43 = vld [vmem:[%s1 + $0x78] sm:$0xff]
    %44 = vmatpush.msra.mxu0 %v43
    %45 = vmatpush.msra.mxu0 %v42
    %46 = vmatpush.msra.mxu0 %v41
    %47 = vmatpush.msra.mxu0 %v40
    %48 = vmatpush.msra.mxu0 %v39
    %49 = vmatpush.msra.mxu0 %v38
    %50 = vmatpush.msra.mxu0 %v37
    %51 = vmatpush.msra.mxu0 %v36
    %52 = vmatpush.msra.mxu0 %v35
    %53 = vmatpush.msra.mxu0 %v34
    %54 = vmatpush.msra.mxu0 %v33
    %55 = vmatpush.msra.mxu0 %v32
    %56 = vmatpush.msra.mxu0 %v31
    %57 = vmatpush.msra.mxu0 %v30
    %58 = vmatpush.msra.mxu0 %v29
    %59 = vmatpush.msra.mxu0 %v28
    %60 = vmatmul.f32.gmra.mxu0 %v24
    %v61 = vpop.f32.mrf.mxu0
    %v62 = vadd.f32 0.0, %v61
    %63 = vmatmul.f32.gmra.mxu0 %v25
    %v64 = vpop.f32.mrf.mxu0
    %v65 = vadd.f32 0.0, %v64
    %66 = vmatmul.f32.gmra.mxu0 %v26
    %v67 = vpop.f32.mrf.mxu0
    %v68 = vadd.f32 0.0, %v67
    %69 = vmatmul.f32.gmra.mxu0 %v27
    %v70 = vpop.f32.mrf.mxu0
    %v71 = vadd.f32 0.0, %v70
    %72 = vdwg.mxu0
    %v73 = vadd.f32 %v20, %v62
    %v74 = vadd.f32 %v21, %v65
    %v75 = vadd.f32 %v22, %v68
    %v76 = vadd.f32 %v23, %v71
    %77 = vst [vmem:[#allocation2] sm:$0xff] %v73
    %78 = vst [vmem:[#allocation2 + $0x8] sm:$0xff] %v74
    %79 = vst [vmem:[#allocation2 + $0x10] sm:$0xff] %v75
    %80 = vst [vmem:[#allocation2 + $0x18] sm:$0xff] %v76
    // Predicated region
    $region14: #{health_attention.5} parent=1 // pred_check
      %p81 = pneg %p12
    $region15: #{health_attention.5} parent=1 // pred_check_branch
      %83 = sbr.rel (%p81) target = $region17
    $region16: #{health_attention.5} parent=1 // pred_region
      %v84 = vld [vmem:[#allocation2] sm:$0xff]
      %v85 = vld [vmem:[#allocation2 + $0x8] sm:$0xff]
      %v86 = vld [vmem:[#allocation2 + $0x10] sm:$0xff]
      %v87 = vld [vmem:[#allocation2 + $0x18] sm:$0xff]
      %88 = vst [vmem:[#allocation3] sm:$0xff] %v84
      %89 = vst [vmem:[#allocation3 + $0x8] sm:$0xff] %v85
      %90 = vst [vmem:[#allocation3 + $0x10] sm:$0xff] %v86
      %91 = vst [vmem:[#allocation3 + $0x18] sm:$0xff] %v87
    $region17: #{health_attention.5} parent=1 // pred_fallthru
      _
    // Predicated region
    $region18: #{health_attention.5} parent=1 // pred_check
      _
    $region19: #{health_attention.5} parent=1 // pred_check_branch
      %93 = sbr.rel (0) target = $region21
    $region20: #{health_attention.5} parent=1 // pred_region
      %95 = vsyncadd [#allocation4], 0
      %s96 = sshll.u32 [#allocation3], 4
      %s97 = int_to_ptr.vmem [resolvable:$true] %s96
      %s98 = sshll.u32 %s2, 4
      %s99 = int_to_ptr.hbm [resolvable:$true] %s98
      %104 = dma.vmem_to_hbm [thread:$0]  %s97, 512, %s99, [#allocation4], 128, 128, 8
    $region21: #{health_attention.5} parent=1 // pred_fallthru
      _
    // Predicated region
    $region22: #{health_attention.5} parent=1 // pred_check
      _
    $region23: #{health_attention.5} parent=1 // pred_check_branch
      %106 = sbr.rel (0) target = $region25
    $region24: #{health_attention.5} parent=1 // pred_region
      %108 = dma.done [#allocation4], 512
    $region25: #{health_attention.5} parent=1 // pred_fallthru
      _
    %109 = vsyncpa [#allocation4], 1

// kernel: health_attention.4
$region0: #{health_attention.4}
  #allocation0 [shape = 'u32[]', space=smem, size = 0x4, offset = 0x4, fixed_abs, tag = 'smem constant byte address 0x4 - core index']
  #allocation1 [shape = 'u32[72,128]{1,0:T(1,128)}', space=vmem, size = 0x9000, scoped, tag = 'internal scratch']
  %s0 = inlined_call_operand.vmem [shape: f32[2,16,384], index: 0, kind: input, shape index: {}]
  %s1 = inlined_call_operand.vmem [shape: f32[16,32], index: 1, kind: input, shape index: {}]
  %s2 = inlined_call_operand.vmem [shape: f32[16,32], index: 2, kind: input, shape index: {}]
  %s3 = inlined_call_operand.vmem [shape: f32[4], index: 3, kind: input, shape index: {}]
  %s4 = inlined_call_operand.vmem [shape: f32[2,16,128], index: 4, kind: output, shape index: {}]
  %s5 = sld [smem:[#allocation0]]
  $region53: #{health_attention.4} parent=0
    _
  %s7 = ssub.s32 1, %s5
  %s8 = scalar_select 0, %s7, %s5
  $region1: #{health_attention.4} parent=0
    #allocation2 [shape = 'u8[512]{0}', space=smem, size = 0x200, scoped, tag = 'input window, operand 3, single buffered']
    #allocation3 [shape = 's32[2]{0}', space=sflag, size = 0x8, scoped, tag = 'scoped memory for health_attention.4']
    %9 = vsyncpa [#allocation3], 0
    loop: start=0, step=1, limit=4
    $region2: #{health_attention.4} parent=1 // loop_pre_header
      _
    $region3: #{health_attention.4} parent=1 // loop_header
      %s11 = sphi 0, %s15
      %p12 = scmp.ge.s32.totalorder %s11, 4
      %s21 = sphi 0, %s23
      %s24 = sphi 0, %s21
      %s25 = sphi 0, %s24
      %s41 = sphi 0, %s25
      %s45 = sphi 0, %s45
      %s47 = sphi 0, %s45
      %s48 = sphi 0, %s47
      %s62 = sphi 0, %s48
      %s66 = sphi 0, %s66
      %s68 = sphi 0, %s66
      %s69 = sphi 0, %s68
      %s83 = sphi 0, %s69
      %s87 = sphi 0, %s87
      %s89 = sphi 0, %s87
      %s90 = sphi 0, %s89
      %s104 = sphi 0, %s90
      %s110 = sphi 0, %s112
      %s113 = sphi 0, %s110
      %s114 = sphi 0, %s113
      %s130 = sphi 0, %s114
    $region4: #{health_attention.4} parent=1 // loop_header_branch
      %14 = sbr.rel (%p12) target = $region8
    $region5: #{health_attention.4} parent=1 // loop_body
      %s16 = ssub.s32 %s11, 1
      %s17 = ssub.s32 %s11, 2
      %s18 = sadd.s32 %s11, 1
      %s19 = ssub.s32 %s11, %s18
      %p20 = scmp.eq.s32.totalorder %s19, 0
      %s22 = sadd.s32 %s21, 1
      %s23 = scalar_select %p20, %s21, %s22
      %p26 = pneg %p20
      %p27 = scmp.eq.s32.totalorder %s11, 1
      %p28 = por %p26, %p27
      %p29 = scmp.ne.s32.totalorder %s21, %s24
      %p30 = scmp.eq.s32.totalorder %s11, 0
      %p31 = por %p29, %p30
      %p32 = scmp.ne.s32.totalorder %s21, %s24
      %p33 = scmp.eq.s32.totalorder %s16, 1
      %p34 = por %p32, %p33
      %p35 = scmp.ne.s32.totalorder %s24, %s25
      %p36 = scmp.eq.s32.totalorder %s16, 0
      %p37 = por %p35, %p36
      %p38 = scmp.ne.s32.totalorder %s24, %s25
      %p39 = scmp.eq.s32.totalorder %s17, 1
      %p40 = por %p38, %p39
      %p42 = scmp.ne.s32.totalorder %s25, %s41
      %p43 = scmp.eq.s32.totalorder %s17, 0
      %p44 = por %p42, %p43
      %s46 = sadd.s32 %s45, 1
      %p49 = scmp.eq.s32.totalorder %s11, 1
      %p50 = scmp.ne.s32.totalorder %s45, %s47
      %p51 = scmp.eq.s32.totalorder %s11, 0
      %p52 = por %p50, %p51
      %p53 = scmp.ne.s32.totalorder %s45, %s47
      %p54 = scmp.eq.s32.totalorder %s16, 1
      %p55 = por %p53, %p54
      %p56 = scmp.ne.s32.totalorder %s47, %s48
      %p57 = scmp.eq.s32.totalorder %s16, 0
      %p58 = por %p56, %p57
      %p59 = scmp.ne.s32.totalorder %s47, %s48
      %p60 = scmp.eq.s32.totalorder %s17, 1
      %p61 = por %p59, %p60
      %p63 = scmp.ne.s32.totalorder %s48, %s62
      %p64 = scmp.eq.s32.totalorder %s17, 0
      %p65 = por %p63, %p64
      %s67 = sadd.s32 %s66, 1
      %p70 = scmp.eq.s32.totalorder %s11, 1
      %p71 = scmp.ne.s32.totalorder %s66, %s68
      %p72 = scmp.eq.s32.totalorder %s11, 0
      %p73 = por %p71, %p72
      %p74 = scmp.ne.s32.totalorder %s66, %s68
      %p75 = scmp.eq.s32.totalorder %s16, 1
      %p76 = por %p74, %p75
      %p77 = scmp.ne.s32.totalorder %s68, %s69
      %p78 = scmp.eq.s32.totalorder %s16, 0
      %p79 = por %p77, %p78
      %p80 = scmp.ne.s32.totalorder %s68, %s69
      %p81 = scmp.eq.s32.totalorder %s17, 1
      %p82 = por %p80, %p81
      %p84 = scmp.ne.s32.totalorder %s69, %s83
      %p85 = scmp.eq.s32.totalorder %s17, 0
      %p86 = por %p84, %p85
      %s88 = sadd.s32 %s87, 1
      %p91 = scmp.eq.s32.totalorder %s11, 1
      %p92 = scmp.ne.s32.totalorder %s87, %s89
      %p93 = scmp.eq.s32.totalorder %s11, 0
      %p94 = por %p92, %p93
      %p95 = scmp.ne.s32.totalorder %s87, %s89
      %p96 = scmp.eq.s32.totalorder %s16, 1
      %p97 = por %p95, %p96
      %p98 = scmp.ne.s32.totalorder %s89, %s90
      %p99 = scmp.eq.s32.totalorder %s16, 0
      %p100 = por %p98, %p99
      %p101 = scmp.ne.s32.totalorder %s89, %s90
      %p102 = scmp.eq.s32.totalorder %s17, 1
      %p103 = por %p101, %p102
      %p105 = scmp.ne.s32.totalorder %s90, %s104
      %p106 = scmp.eq.s32.totalorder %s17, 0
      %p107 = por %p105, %p106
      %s108 = ssub.s32 %s11, %s18
      %p109 = scmp.eq.s32.totalorder %s108, 0
      %s111 = sadd.s32 %s110, 1
      %s112 = scalar_select %p109, %s110, %s111
      %p115 = pneg %p109
      %p116 = scmp.eq.s32.totalorder %s11, 1
      %p117 = por %p115, %p116
      %p118 = scmp.ne.s32.totalorder %s110, %s113
      %p119 = scmp.eq.s32.totalorder %s11, 0
      %p120 = por %p118, %p119
      %p121 = scmp.ne.s32.totalorder %s110, %s113
      %p122 = scmp.eq.s32.totalorder %s16, 1
      %p123 = por %p121, %p122
      %p124 = scmp.ne.s32.totalorder %s113, %s114
      %p125 = scmp.eq.s32.totalorder %s16, 0
      %p126 = por %p124, %p125
      %p127 = scmp.ne.s32.totalorder %s113, %s114
      %p128 = scmp.eq.s32.totalorder %s17, 1
      %p129 = por %p127, %p128
      %p131 = scmp.ne.s32.totalorder %s114, %s130
      %p132 = scmp.eq.s32.totalorder %s17, 0
      %p133 = por %p131, %p132
      %p134 = scmp.le.s32.totalorder 1, %s11
      %p135 = scmp.lt.s32.totalorder %s11, 3
      %p136 = pnand %p134, %p135
      %p137 = pneg %p136
      // Predicated region
      $region9: #{health_attention.4} parent=5 // pred_check
        _
      $region10: #{health_attention.4} parent=5 // pred_check_branch
        %139 = sbr.rel (%p136) target = $region12
      $region11: #{health_attention.4} parent=5 // pred_region
        %s140 = ssub.s32 %s11, 1
        // Predicated region
        $region13: #{health_attention.4} parent=11 // pred_check
          %p141 = pneg %p58
        $region14: #{health_attention.4} parent=11 // pred_check_branch
          %143 = sbr.rel (%p141) target = $region16
        $region15: #{health_attention.4} parent=11 // pred_region
          _
        $region16: #{health_attention.4} parent=11 // pred_fallthru
          _
        // Predicated region
        $region17: #{health_attention.4} parent=11 // pred_check
          %p144 = pneg %p79
        $region18: #{health_attention.4} parent=11 // pred_check_branch
          %146 = sbr.rel (%p144) target = $region20
        $region19: #{health_attention.4} parent=11 // pred_region
          _
        $region20: #{health_attention.4} parent=11 // pred_fallthru
          _
        // Predicated region
        $region21: #{health_attention.4} parent=11 // pred_check
          %p147 = pneg %p100
        $region22: #{health_attention.4} parent=11 // pred_check_branch
          %149 = sbr.rel (%p147) target = $region24
        $region23: #{health_attention.4} parent=11 // pred_region
          %151 = vsyncadd [#allocation3], 0
          %s153 = sshll.u32 %s3, 4
          %s154 = int_to_ptr.vmem [resolvable:$true] %s153
          %156 = dma.vmem_to_smem %s154, 16, [#allocation2], [#allocation3]
        $region24: #{health_attention.4} parent=11 // pred_fallthru
          _
      $region12: #{health_attention.4} parent=5 // pred_fallthru
        _
      %p157 = scmp.lt.s32.totalorder %s11, 2
      // Predicated region
      $region25: #{health_attention.4} parent=5 // pred_check
        %p158 = pneg %p157
      $region26: #{health_attention.4} parent=5 // pred_check_branch
        %160 = sbr.rel (%p158) target = $region28
      $region27: #{health_attention.4} parent=5 // pred_region
        // Predicated region
        $region29: #{health_attention.4} parent=27 // pred_check
          %p161 = pneg %p31
        $region30: #{health_attention.4} parent=27 // pred_check_branch
          %163 = sbr.rel (%p161) target = $region32
        $region31: #{health_attention.4} parent=27 // pred_region
          %p164 = scmp.lt.s32.totalorder %s11, 1
          %s165 = scalar_select %p164, %s11, 1
          %s166 = smul.addr %s165, 6
          %s167 = smul.addr %s166, 8
          %s168 = scalar_lea.vmem %s0, %s167
        $region32: #{health_attention.4} parent=27 // pred_fallthru
          _
      $region28: #{health_attention.4} parent=5 // pred_fallthru
        _
      %p169 = scmp.le.s32.totalorder 1, %s11
      %p170 = scmp.lt.s32.totalorder %s11, 3
      %p171 = pnand %p169, %p170
      %p172 = pneg %p171
      // Predicated region
      $region33: #{health_attention.4} parent=5 // pred_check
        _
      $region34: #{health_attention.4} parent=5 // pred_check_branch
        %174 = sbr.rel (%p171) target = $region36
      $region35: #{health_attention.4} parent=5 // pred_region
        %s175 = ssub.s32 %s11, 1
        // Predicated region
        $region37: #{health_attention.4} parent=35 // pred_check
          %p176 = pneg %p100
        $region38: #{health_attention.4} parent=35 // pred_check_branch
          %178 = sbr.rel (%p176) target = $region40
        $region39: #{health_attention.4} parent=35 // pred_region
          %180 = dma.done [#allocation3], 16
        $region40: #{health_attention.4} parent=35 // pred_fallthru
          _
        %181 = sfence
        %p182 = scmp.lt.s32.totalorder %s16, 1
        %s183 = scalar_select %p182, %s16, 1
        %s184 = smul.addr %s183, 6
        %s185 = smul.addr %s184, 8
        %s186 = scalar_lea.vmem %s0, %s185
        %p187 = pneg %p37
        %p188 = pneg %p34
        %p189 = pneg %p58
        %p190 = pneg %p55
        %p191 = pneg %p79
        %p192 = pneg %p76
        %p193 = pneg %p100
        %p194 = pneg %p97
        %p195 = pneg %p126
        %p196 = pneg %p123
        %p197 = scmp.lt.s32.totalorder %s16, 1
        %s198 = scalar_select %p197, %s16, 1
        %s199 = smul.addr %s198, 2
        %s200 = smul.addr %s199, 8
        %s201 = scalar_lea.vmem %s4, %s200
        %p202 = scmp.lt.s32.totalorder %s16, 1
        %s203 = scalar_select %p202, %s16, 1
        %s204 = smul.addr %s203, 6
        %s205 = smul.addr %s204, 8
        %s206 = scalar_lea.vmem %s0, %s205
        %p207 = scmp.lt.s32.totalorder %s16, 1
        %s208 = scalar_select %p207, %s16, 1
        %s209 = smul.addr %s208, 2
        %s210 = smul.addr %s209, 8
        %s211 = scalar_lea.vmem %s4, %s210
        %v212 = vld [vmem:[%s1] sm:$0xff]
        %v213 = vld [vmem:[%s1 + $0x8] sm:$0xff]
        %v214 = vld [vmem:[%s2] sm:$0xff]
        %v215 = vld [vmem:[%s2 + $0x8] sm:$0xff]
        %v216 = vld [vmem:[%s206] sm:$0xff]
        %v217 = vld [vmem:[%s206 + $0x18] sm:$0xff]
        %v218 = vld [vmem:[%s206 + $0x8] sm:$0xff]
        %v219 = vld [vmem:[%s206 + $0x20] sm:$0xff]
        %v220 = vld [vmem:[%s206 + $0x10] sm:$0xff]
        %v221 = vld [vmem:[%s206 + $0x28] sm:$0xff]
        %v222 = vsub.f32 0.0, %v216
        %v223 = vsub.f32 0.0, %v217
        %226 = vrot.lane.b32.xlu0 %v222, 112
        %v227 = vpop.permute.xlu0 %226
        %228 = vrot.lane.b32.xlu0 %v223, 112
        %v229 = vpop.permute.xlu0 %228
        %234 = vrot.lane.b32.xlu0 %v216, 16
        %v235 = vpop.permute.xlu0 %234
        %236 = vrot.lane.b32.xlu0 %v217, 16
        %v237 = vpop.permute.xlu0 %236
        %vm240 = vcmask 130048
        %v241 = vsel %vm240, %v227, %v235
        %v242 = vsel %vm240, %v229, %v237
        %v243 = vmul.f32 %v216, %v212
        %v244 = vmul.f32 %v217, %v213
        %v245 = vmul.f32 %v241, %v214
        %v246 = vmul.f32 %v242, %v215
        %v247 = vadd.f32 %v243, %v245
        %v248 = vadd.f32 %v244, %v246
        %v249 = vmul.f32 %v247, 0.17677669
        %v250 = vmul.f32 %v248, 0.17677669
        %v251 = vsub.f32 0.0, %v218
        %v252 = vsub.f32 0.0, %v219
        %255 = vrot.lane.b32.xlu0 %v251, 112
        %v256 = vpop.permute.xlu0 %255
        %257 = vrot.lane.b32.xlu0 %v252, 112
        %v258 = vpop.permute.xlu0 %257
        %263 = vrot.lane.b32.xlu0 %v218, 16
        %v264 = vpop.permute.xlu0 %263
        %265 = vrot.lane.b32.xlu0 %v219, 16
        %v266 = vpop.permute.xlu0 %265
        %v269 = vsel %vm240, %v256, %v264
        %v270 = vsel %vm240, %v258, %v266
        %v271 = vmul.f32 %v218, %v212
        %v272 = vmul.f32 %v219, %v213
        %v273 = vmul.f32 %v269, %v214
        %v274 = vmul.f32 %v270, %v215
        %v275 = vadd.f32 %v271, %v273
        %v276 = vadd.f32 %v272, %v274
        %s277 = sld [smem:[#allocation2]]
        %v278 = vstv %s277
        %vm279 = vcmask 261120
        %v281 = vsel %vm279, %v249, 0
        %v284 = vsel %vm279, %v250, 0
        %v287 = vsel %vm279, %v275, 0
        %v290 = vsel %vm279, %v276, 0
        %292 = vmatpush.xpose.msra.mxu0 0.0
        %293 = vmatpush.xpose.msra.mxu0 0.0
        %294 = vmatpush.xpose.msra.mxu0 0.0
        %295 = vmatpush.xpose.msra.mxu0 0.0
        %296 = vmatpush.xpose.msra.mxu0 0.0
        %297 = vmatpush.xpose.msra.mxu0 0.0
        %298 = vmatpush.xpose.msra.mxu0 0.0
        %299 = vmatpush.xpose.msra.mxu0 0.0
        %300 = vmatpush.xpose.msra.mxu0 0.0
        %301 = vmatpush.xpose.msra.mxu0 0.0
        %302 = vmatpush.xpose.msra.mxu0 0.0
        %303 = vmatpush.xpose.msra.mxu0 0.0
        %304 = vmatpush.xpose.msra.mxu0 0.0
        %305 = vmatpush.xpose.msra.mxu0 0.0
        %306 = vmatpush.xpose.msra.mxu0 %v290
        %307 = vmatpush.xpose.msra.mxu0 %v287
        %308 = vmatmul.f32.gmra.mxu0 %v281
        %v309 = vpop.f32.mrf.mxu0
        %v310 = vadd.f32 %v278, %v309
        %311 = vmatmul.f32.gmra.mxu0 %v284
        %v312 = vpop.f32.mrf.mxu0
        %v313 = vadd.f32 %v278, %v312
        %314 = vdwg.mxu0
        %v315 = vsel %vm240, %v310, -inf
        %316 = vmax.xlane.f32.xlu0 %v315
        %v317 = vpop.xlane.xlu0 %316
        %v318 = vsel %vm240, %v313, -inf
        %319 = vmax.xlane.f32.xlu0 %v318
        %v320 = vpop.xlane.xlu0 %319
        %v321 = vsub.f32 %v310, %v317
        %v322 = vsub.f32 %v313, %v320
        %v323 = vmul.f32 %v321, 1.442695
        %v324 = vpow.pop %v323
        %v325 = vmul.f32 %v322, 1.442695
        %v326 = vpow.pop %v325
        %v327 = vsel %vm240, %v324, 0.0
        %328 = vadd.xlane.f32.xlu0 %v327
        %v329 = vpop.xlane.xlu0 %328
        %v330 = vsel %vm240, %v326, 0.0
        %331 = vadd.xlane.f32.xlu0 %v330
        %v332 = vpop.xlane.xlu0 %331
        %v333 = vrcp.pop %v329
        %v334 = vmul.f32 %v329, %v333
        %v335 = vsub.f32 1.0, %v334
        %v336 = vmul.f32 %v333, %v335
        %v337 = vadd.f32 %v333, %v336
        %vm338 = vweird.f32 %v329
        %vm339 = vweird.f32 %v333
        %vm340 = vmor %vm338, %vm339
        %v341 = vsel %vm340, %v333, %v337
        %v342 = vand.u32 2147483647, %v329
        %vm343 = vcmp.eq.f32.partialorder %v342, 8.507059e+37
        %v344 = vand.u32 %v329, 2147483648
        %v345 = vor.u32 1.1754944e-38, %v344
        %v346 = vsel %vm343, %v345, %v341
        %v347 = vmul.f32 %v324, %v346
        %v348 = vrcp.pop %v332
        %v349 = vmul.f32 %v332, %v348
        %v350 = vsub.f32 1.0, %v349
        %v351 = vmul.f32 %v348, %v350
        %v352 = vadd.f32 %v348, %v351
        %vm353 = vweird.f32 %v332
        %vm354 = vweird.f32 %v348
        %vm355 = vmor %vm353, %vm354
        %v356 = vsel %vm355, %v348, %v352
        %v357 = vand.u32 2147483647, %v332
        %vm358 = vcmp.eq.f32.partialorder %v357, 8.507059e+37
        %v359 = vand.u32 %v332, 2147483648
        %v360 = vor.u32 1.1754944e-38, %v359
        %v361 = vsel %vm358, %v360, %v356
        %v362 = vmul.f32 %v326, %v361
        %v364 = vsel %vm240, %v347, 0
        %v367 = vsel %vm240, %v362, 0
        %369 = vmatpush.msra.mxu0 0.0
        %370 = vmatpush.msra.mxu0 0.0
        %371 = vmatpush.msra.mxu0 0.0
        %372 = vmatpush.msra.mxu0 0.0
        %373 = vmatpush.msra.mxu0 0.0
        %374 = vmatpush.msra.mxu0 0.0
        %375 = vmatpush.msra.mxu0 0.0
        %376 = vmatpush.msra.mxu0 0.0
        %377 = vmatpush.msra.mxu0 0.0
        %378 = vmatpush.msra.mxu0 0.0
        %379 = vmatpush.msra.mxu0 0.0
        %380 = vmatpush.msra.mxu0 0.0
        %381 = vmatpush.msra.mxu0 0.0
        %382 = vmatpush.msra.mxu0 0.0
        %383 = vmatpush.msra.mxu0 %v221
        %384 = vmatpush.msra.mxu0 %v220
        %385 = vmatmul.f32.gmra.mxu0 %v364
        %v386 = vpop.f32.mrf.mxu0
        %v387 = vadd.f32 0.0, %v386
        %388 = vmatmul.f32.gmra.mxu0 %v367
        %v389 = vpop.f32.mrf.mxu0
        %v390 = vadd.f32 0.0, %v389
        %391 = vdwg.mxu0
        %392 = vrot.lane.b32.xlu0 %v222, 80
        %v393 = vpop.permute.xlu0 %392
        %394 = vrot.lane.b32.xlu0 %v223, 80
        %v395 = vpop.permute.xlu0 %394
        %398 = vrot.lane.b32.xlu0 %v216, 112
        %v399 = vpop.permute.xlu0 %398
        %400 = vrot.lane.b32.xlu0 %v217, 112
        %v401 = vpop.permute.xlu0 %400
        %v404 = vsel %vm240, %v393, %v399
        %v405 = vsel %vm240, %v395, %v401
        %408 = vrot.lane.b32.xlu0 %v212, 32
        %v409 = vpop.permute.xlu0 %408
        %410 = vrot.lane.b32.xlu0 %v213, 32
        %v411 = vpop.permute.xlu0 %410
        %v414 = vmul.f32 %v216, %v409
        %v415 = vmul.f32 %v217, %v411
        %v416 = vmul.f32 %v404, %v214
        %v417 = vmul.f32 %v405, %v215
        %420 = vrot.lane.b32.xlu0 %v416, 32
        %v421 = vpop.permute.xlu0 %420
        %422 = vrot.lane.b32.xlu0 %v417, 32
        %v423 = vpop.permute.xlu0 %422
        %v426 = vadd.f32 %v414, %v421
        %v427 = vadd.f32 %v415, %v423
        %v428 = vmul.f32 %v426, 0.17677669
        %v429 = vmul.f32 %v427, 0.17677669
        %430 = vrot.lane.b32.xlu0 %v251, 80
        %v431 = vpop.permute.xlu0 %430
        %432 = vrot.lane.b32.xlu0 %v252, 80
        %v433 = vpop.permute.xlu0 %432
        %436 = vrot.lane.b32.xlu0 %v218, 112
        %v437 = vpop.permute.xlu0 %436
        %438 = vrot.lane.b32.xlu0 %v219, 112
        %v439 = vpop.permute.xlu0 %438
        %v442 = vsel %vm240, %v431, %v437
        %v443 = vsel %vm240, %v433, %v439
        %v444 = vmul.f32 %v218, %v409
        %v445 = vmul.f32 %v219, %v411
        %v446 = vmul.f32 %v442, %v214
        %v447 = vmul.f32 %v443, %v215
        %450 = vrot.lane.b32.xlu0 %v446, 32
        %v451 = vpop.permute.xlu0 %450
        %452 = vrot.lane.b32.xlu0 %v447, 32
        %v453 = vpop.permute.xlu0 %452
        %v456 = vadd.f32 %v444, %v451
        %v457 = vadd.f32 %v445, %v453
        %s458 = sld [smem:[#allocation2 + $0x1]]
        %v459 = vstv %s458
        %462 = vrot.lane.b32.xlu0 %v428, 96
        %v463 = vpop.permute.xlu0 %462
        %464 = vrot.lane.b32.xlu0 %v429, 96
        %v465 = vpop.permute.xlu0 %464
        %468 = vrot.lane.b32.xlu0 %v456, 96
        %v469 = vpop.permute.xlu0 %468
        %470 = vrot.lane.b32.xlu0 %v457, 96
        %v471 = vpop.permute.xlu0 %470
        %v472 = vsel %vm279, %v463, 0
        %v474 = vsel %vm279, %v465, 0
        %v476 = vsel %vm279, %v469, 0
        %v478 = vsel %vm279, %v471, 0
        %480 = vmatpush.xpose.msra.mxu0 0.0
        %481 = vmatpush.xpose.msra.mxu0 0.0
        %482 = vmatpush.xpose.msra.mxu0 0.0
        %483 = vmatpush.xpose.msra.mxu0 0.0
        %484 = vmatpush.xpose.msra.mxu0 0.0
        %485 = vmatpush.xpose.msra.mxu0 0.0
        %486 = vmatpush.xpose.msra.mxu0 0.0
        %487 = vmatpush.xpose.msra.mxu0 0.0
        %488 = vmatpush.xpose.msra.mxu0 0.0
        %489 = vmatpush.xpose.msra.mxu0 0.0
        %490 = vmatpush.xpose.msra.mxu0 0.0
        %491 = vmatpush.xpose.msra.mxu0 0.0
        %492 = vmatpush.xpose.msra.mxu0 0.0
        %493 = vmatpush.xpose.msra.mxu0 0.0
        %494 = vmatpush.xpose.msra.mxu0 %v478
        %495 = vmatpush.xpose.msra.mxu0 %v476
        %496 = vmatmul.f32.gmra.mxu0 %v472
        %v497 = vpop.f32.mrf.mxu0
        %v498 = vadd.f32 %v459, %v497
        %499 = vmatmul.f32.gmra.mxu0 %v474
        %v500 = vpop.f32.mrf.mxu0
        %v501 = vadd.f32 %v459, %v500
        %502 = vdwg.mxu0
        %v503 = vsel %vm240, %v498, -inf
        %504 = vmax.xlane.f32.xlu0 %v503
        %v505 = vpop.xlane.xlu0 %504
        %v506 = vsel %vm240, %v501, -inf
        %507 = vmax.xlane.f32.xlu0 %v506
        %v508 = vpop.xlane.xlu0 %507
        %v509 = vsub.f32 %v498, %v505
        %v510 = vsub.f32 %v501, %v508
        %v511 = vmul.f32 %v509, 1.442695
        %v512 = vpow.pop %v511
        %v513 = vmul.f32 %v510, 1.442695
        %v514 = vpow.pop %v513
        %v515 = vsel %vm240, %v512, 0.0
        %516 = vadd.xlane.f32.xlu0 %v515
        %v517 = vpop.xlane.xlu0 %516
        %v518 = vsel %vm240, %v514, 0.0
        %519 = vadd.xlane.f32.xlu0 %v518
        %v520 = vpop.xlane.xlu0 %519
        %v521 = vrcp.pop %v517
        %v522 = vmul.f32 %v517, %v521
        %v523 = vsub.f32 1.0, %v522
        %v524 = vmul.f32 %v521, %v523
        %v525 = vadd.f32 %v521, %v524
        %vm526 = vweird.f32 %v517
        %vm527 = vweird.f32 %v521
        %vm528 = vmor %vm526, %vm527
        %v529 = vsel %vm528, %v521, %v525
        %v530 = vand.u32 2147483647, %v517
        %vm531 = vcmp.eq.f32.partialorder %v530, 8.507059e+37
        %v532 = vand.u32 %v517, 2147483648
        %v533 = vor.u32 1.1754944e-38, %v532
        %v534 = vsel %vm531, %v533, %v529
        %v535 = vmul.f32 %v512, %v534
        %v536 = vrcp.pop %v520
        %v537 = vmul.f32 %v520, %v536
        %v538 = vsub.f32 1.0, %v537
        %v539 = vmul.f32 %v536, %v538
        %v540 = vadd.f32 %v536, %v539
        %vm541 = vweird.f32 %v520
        %vm542 = vweird.f32 %v536
        %vm543 = vmor %vm541, %vm542
        %v544 = vsel %vm543, %v536, %v540
        %v545 = vand.u32 2147483647, %v520
        %vm546 = vcmp.eq.f32.partialorder %v545, 8.507059e+37
        %v547 = vand.u32 %v520, 2147483648
        %v548 = vor.u32 1.1754944e-38, %v547
        %v549 = vsel %vm546, %v548, %v544
        %v550 = vmul.f32 %v514, %v549
        %553 = vrot.lane.b32.xlu0 %v220, 96
        %v554 = vpop.permute.xlu0 %553
        %555 = vrot.lane.b32.xlu0 %v221, 96
        %v556 = vpop.permute.xlu0 %555
        %v560 = vsel %vm240, %v535, 0
        %v563 = vsel %vm240, %v550, 0
        %565 = vmatpush.msra.mxu0 0.0
        %566 = vmatpush.msra.mxu0 0.0
        %567 = vmatpush.msra.mxu0 0.0
        %568 = vmatpush.msra.mxu0 0.0
        %569 = vmatpush.msra.mxu0 0.0
        %570 = vmatpush.msra.mxu0 0.0
        %571 = vmatpush.msra.mxu0 0.0
        %572 = vmatpush.msra.mxu0 0.0
        %573 = vmatpush.msra.mxu0 0.0
        %574 = vmatpush.msra.mxu0 0.0
        %575 = vmatpush.msra.mxu0 0.0
        %576 = vmatpush.msra.mxu0 0.0
        %577 = vmatpush.msra.mxu0 0.0
        %578 = vmatpush.msra.mxu0 0.0
        %579 = vmatpush.msra.mxu0 %v556
        %580 = vmatpush.msra.mxu0 %v554
        %581 = vmatmul.f32.gmra.mxu0 %v560
        %v582 = vpop.f32.mrf.mxu0
        %v583 = vadd.f32 0.0, %v582
        %584 = vmatmul.f32.gmra.mxu0 %v563
        %v585 = vpop.f32.mrf.mxu0
        %v586 = vadd.f32 0.0, %v585
        %587 = vdwg.mxu0
        %588 = vrot.lane.b32.xlu0 %v222, 48
        %v589 = vpop.permute.xlu0 %588
        %590 = vrot.lane.b32.xlu0 %v223, 48
        %v591 = vpop.permute.xlu0 %590
        %594 = vrot.lane.b32.xlu0 %v216, 80
        %v595 = vpop.permute.xlu0 %594
        %596 = vrot.lane.b32.xlu0 %v217, 80
        %v597 = vpop.permute.xlu0 %596
        %v600 = vsel %vm240, %v589, %v595
        %v601 = vsel %vm240, %v591, %v597
        %602 = vrot.lane.b32.xlu0 %v212, 64
        %v603 = vpop.permute.xlu0 %602
        %604 = vrot.lane.b32.xlu0 %v213, 64
        %v605 = vpop.permute.xlu0 %604
        %v608 = vmul.f32 %v216, %v603
        %v609 = vmul.f32 %v217, %v605
        %v610 = vmul.f32 %v600, %v214
        %v611 = vmul.f32 %v601, %v215
        %614 = vrot.lane.b32.xlu0 %v610, 64
        %v615 = vpop.permute.xlu0 %614
        %616 = vrot.lane.b32.xlu0 %v611, 64
        %v617 = vpop.permute.xlu0 %616
        %v620 = vadd.f32 %v608, %v615
        %v621 = vadd.f32 %v609, %v617
        %v622 = vmul.f32 %v620, 0.17677669
        %v623 = vmul.f32 %v621, 0.17677669
        %624 = vrot.lane.b32.xlu0 %v251, 48
        %v625 = vpop.permute.xlu0 %624
        %626 = vrot.lane.b32.xlu0 %v252, 48
        %v627 = vpop.permute.xlu0 %626
        %630 = vrot.lane.b32.xlu0 %v218, 80
        %v631 = vpop.permute.xlu0 %630
        %632 = vrot.lane.b32.xlu0 %v219, 80
        %v633 = vpop.permute.xlu0 %632
        %v636 = vsel %vm240, %v625, %v631
        %v637 = vsel %vm240, %v627, %v633
        %v638 = vmul.f32 %v218, %v603
        %v639 = vmul.f32 %v219, %v605
        %v640 = vmul.f32 %v636, %v214
        %v641 = vmul.f32 %v637, %v215
        %644 = vrot.lane.b32.xlu0 %v640, 64
        %v645 = vpop.permute.xlu0 %644
        %646 = vrot.lane.b32.xlu0 %v641, 64
        %v647 = vpop.permute.xlu0 %646
        %v650 = vadd.f32 %v638, %v645
        %v651 = vadd.f32 %v639, %v647
        %s652 = sld [smem:[#allocation2 + $0x2]]
        %v653 = vstv %s652
        %656 = vrot.lane.b32.xlu0 %v622, 64
        %v657 = vpop.permute.xlu0 %656
        %658 = vrot.lane.b32.xlu0 %v623, 64
        %v659 = vpop.permute.xlu0 %658
        %662 = vrot.lane.b32.xlu0 %v650, 64
        %v663 = vpop.permute.xlu0 %662
        %664 = vrot.lane.b32.xlu0 %v651, 64
        %v665 = vpop.permute.xlu0 %664
        %v666 = vsel %vm279, %v657, 0
        %v668 = vsel %vm279, %v659, 0
        %v670 = vsel %vm279, %v663, 0
        %v672 = vsel %vm279, %v665, 0
        %674 = vmatpush.xpose.msra.mxu0 0.0
        %675 = vmatpush.xpose.msra.mxu0 0.0
        %676 = vmatpush.xpose.msra.mxu0 0.0
        %677 = vmatpush.xpose.msra.mxu0 0.0
        %678 = vmatpush.xpose.msra.mxu0 0.0
        %679 = vmatpush.xpose.msra.mxu0 0.0
        %680 = vmatpush.xpose.msra.mxu0 0.0
        %681 = vmatpush.xpose.msra.mxu0 0.0
        %682 = vmatpush.xpose.msra.mxu0 0.0
        %683 = vmatpush.xpose.msra.mxu0 0.0
        %684 = vmatpush.xpose.msra.mxu0 0.0
        %685 = vmatpush.xpose.msra.mxu0 0.0
        %686 = vmatpush.xpose.msra.mxu0 0.0
        %687 = vmatpush.xpose.msra.mxu0 0.0
        %688 = vmatpush.xpose.msra.mxu0 %v672
        %689 = vmatpush.xpose.msra.mxu0 %v670
        %690 = vmatmul.f32.gmra.mxu0 %v666
        %v691 = vpop.f32.mrf.mxu0
        %v692 = vadd.f32 %v653, %v691
        %693 = vmatmul.f32.gmra.mxu0 %v668
        %v694 = vpop.f32.mrf.mxu0
        %v695 = vadd.f32 %v653, %v694
        %696 = vdwg.mxu0
        %v697 = vsel %vm240, %v692, -inf
        %698 = vmax.xlane.f32.xlu0 %v697
        %v699 = vpop.xlane.xlu0 %698
        %v700 = vsel %vm240, %v695, -inf
        %701 = vmax.xlane.f32.xlu0 %v700
        %v702 = vpop.xlane.xlu0 %701
        %v703 = vsub.f32 %v692, %v699
        %v704 = vsub.f32 %v695, %v702
        %v705 = vmul.f32 %v703, 1.442695
        %v706 = vpow.pop %v705
        %v707 = vmul.f32 %v704, 1.442695
        %v708 = vpow.pop %v707
        %v709 = vsel %vm240, %v706, 0.0
        %710 = vadd.xlane.f32.xlu0 %v709
        %v711 = vpop.xlane.xlu0 %710
        %v712 = vsel %vm240, %v708, 0.0
        %713 = vadd.xlane.f32.xlu0 %v712
        %v714 = vpop.xlane.xlu0 %713
        %v715 = vrcp.pop %v711
        %v716 = vmul.f32 %v711, %v715
        %v717 = vsub.f32 1.0, %v716
        %v718 = vmul.f32 %v715, %v717
        %v719 = vadd.f32 %v715, %v718
        %vm720 = vweird.f32 %v711
        %vm721 = vweird.f32 %v715
        %vm722 = vmor %vm720, %vm721
        %v723 = vsel %vm722, %v715, %v719
        %v724 = vand.u32 2147483647, %v711
        %vm725 = vcmp.eq.f32.partialorder %v724, 8.507059e+37
        %v726 = vand.u32 %v711, 2147483648
        %v727 = vor.u32 1.1754944e-38, %v726
        %v728 = vsel %vm725, %v727, %v723
        %v729 = vmul.f32 %v706, %v728
        %v730 = vrcp.pop %v714
        %v731 = vmul.f32 %v714, %v730
        %v732 = vsub.f32 1.0, %v731
        %v733 = vmul.f32 %v730, %v732
        %v734 = vadd.f32 %v730, %v733
        %vm735 = vweird.f32 %v714
        %vm736 = vweird.f32 %v730
        %vm737 = vmor %vm735, %vm736
        %v738 = vsel %vm737, %v730, %v734
        %v739 = vand.u32 2147483647, %v714
        %vm740 = vcmp.eq.f32.partialorder %v739, 8.507059e+37
        %v741 = vand.u32 %v714, 2147483648
        %v742 = vor.u32 1.1754944e-38, %v741
        %v743 = vsel %vm740, %v742, %v738
        %v744 = vmul.f32 %v708, %v743
        %745 = vrot.lane.b32.xlu0 %v220, 64
        %v746 = vpop.permute.xlu0 %745
        %747 = vrot.lane.b32.xlu0 %v221, 64
        %v748 = vpop.permute.xlu0 %747
        %v752 = vsel %vm240, %v729, 0
        %v755 = vsel %vm240, %v744, 0
        %757 = vmatpush.msra.mxu0 0.0
        %758 = vmatpush.msra.mxu0 0.0
        %759 = vmatpush.msra.mxu0 0.0
        %760 = vmatpush.msra.mxu0 0.0
        %761 = vmatpush.msra.mxu0 0.0
        %762 = vmatpush.msra.mxu0 0.0
        %763 = vmatpush.msra.mxu0 0.0
        %764 = vmatpush.msra.mxu0 0.0
        %765 = vmatpush.msra.mxu0 0.0
        %766 = vmatpush.msra.mxu0 0.0
        %767 = vmatpush.msra.mxu0 0.0
        %768 = vmatpush.msra.mxu0 0.0
        %769 = vmatpush.msra.mxu0 0.0
        %770 = vmatpush.msra.mxu0 0.0
        %771 = vmatpush.msra.mxu0 %v748
        %772 = vmatpush.msra.mxu0 %v746
        %773 = vmatmul.f32.gmra.mxu0 %v752
        %v774 = vpop.f32.mrf.mxu0
        %v775 = vadd.f32 0.0, %v774
        %776 = vmatmul.f32.gmra.mxu0 %v755
        %v777 = vpop.f32.mrf.mxu0
        %v778 = vadd.f32 0.0, %v777
        %779 = vdwg.mxu0
        %780 = vrot.lane.b32.xlu0 %v222, 16
        %v781 = vpop.permute.xlu0 %780
        %782 = vrot.lane.b32.xlu0 %v223, 16
        %v783 = vpop.permute.xlu0 %782
        %786 = vrot.lane.b32.xlu0 %v216, 48
        %v787 = vpop.permute.xlu0 %786
        %788 = vrot.lane.b32.xlu0 %v217, 48
        %v789 = vpop.permute.xlu0 %788
        %v792 = vsel %vm240, %v781, %v787
        %v793 = vsel %vm240, %v783, %v789
        %794 = vrot.lane.b32.xlu0 %v212, 96
        %v795 = vpop.permute.xlu0 %794
        %796 = vrot.lane.b32.xlu0 %v213, 96
        %v797 = vpop.permute.xlu0 %796
        %v800 = vmul.f32 %v216, %v795
        %v801 = vmul.f32 %v217, %v797
        %v802 = vmul.f32 %v792, %v214
        %v803 = vmul.f32 %v793, %v215
        %806 = vrot.lane.b32.xlu0 %v802, 96
        %v807 = vpop.permute.xlu0 %806
        %808 = vrot.lane.b32.xlu0 %v803, 96
        %v809 = vpop.permute.xlu0 %808
        %v812 = vadd.f32 %v800, %v807
        %v813 = vadd.f32 %v801, %v809
        %v814 = vmul.f32 %v812, 0.17677669
        %v815 = vmul.f32 %v813, 0.17677669
        %816 = vrot.lane.b32.xlu0 %v251, 16
        %v817 = vpop.permute.xlu0 %816
        %818 = vrot.lane.b32.xlu0 %v252, 16
        %v819 = vpop.permute.xlu0 %818
        %822 = vrot.lane.b32.xlu0 %v218, 48
        %v823 = vpop.permute.xlu0 %822
        %824 = vrot.lane.b32.xlu0 %v219, 48
        %v825 = vpop.permute.xlu0 %824
        %v828 = vsel %vm240, %v817, %v823
        %v829 = vsel %vm240, %v819, %v825
        %v830 = vmul.f32 %v218, %v795
        %v831 = vmul.f32 %v219, %v797
        %v832 = vmul.f32 %v828, %v214
        %v833 = vmul.f32 %v829, %v215
        %836 = vrot.lane.b32.xlu0 %v832, 96
        %v837 = vpop.permute.xlu0 %836
        %838 = vrot.lane.b32.xlu0 %v833, 96
        %v839 = vpop.permute.xlu0 %838
        %v842 = vadd.f32 %v830, %v837
        %v843 = vadd.f32 %v831, %v839
        %s844 = sld [smem:[#allocation2 + $0x3]]
        %v845 = vstv %s844
        %848 = vrot.lane.b32.xlu0 %v814, 32
        %v849 = vpop.permute.xlu0 %848
        %850 = vrot.lane.b32.xlu0 %v815, 32
        %v851 = vpop.permute.xlu0 %850
        %854 = vrot.lane.b32.xlu0 %v842, 32
        %v855 = vpop.permute.xlu0 %854
        %856 = vrot.lane.b32.xlu0 %v843, 32
        %v857 = vpop.permute.xlu0 %856
        %v858 = vsel %vm279, %v849, 0
        %v860 = vsel %vm279, %v851, 0
        %v862 = vsel %vm279, %v855, 0
        %v864 = vsel %vm279, %v857, 0
        %866 = vmatpush.xpose.msra.mxu0 0.0
        %867 = vmatpush.xpose.msra.mxu0 0.0
        %868 = vmatpush.xpose.msra.mxu0 0.0
        %869 = vmatpush.xpose.msra.mxu0 0.0
        %870 = vmatpush.xpose.msra.mxu0 0.0
        %871 = vmatpush.xpose.msra.mxu0 0.0
        %872 = vmatpush.xpose.msra.mxu0 0.0
        %873 = vmatpush.xpose.msra.mxu0 0.0
        %874 = vmatpush.xpose.msra.mxu0 0.0
        %875 = vmatpush.xpose.msra.mxu0 0.0
        %876 = vmatpush.xpose.msra.mxu0 0.0
        %877 = vmatpush.xpose.msra.mxu0 0.0
        %878 = vmatpush.xpose.msra.mxu0 0.0
        %879 = vmatpush.xpose.msra.mxu0 0.0
        %880 = vmatpush.xpose.msra.mxu0 %v864
        %881 = vmatpush.xpose.msra.mxu0 %v862
        %882 = vmatmul.f32.gmra.mxu0 %v858
        %v883 = vpop.f32.mrf.mxu0
        %v884 = vadd.f32 %v845, %v883
        %885 = vmatmul.f32.gmra.mxu0 %v860
        %v886 = vpop.f32.mrf.mxu0
        %v887 = vadd.f32 %v845, %v886
        %888 = vdwg.mxu0
        %v889 = vsel %vm240, %v884, -inf
        %890 = vmax.xlane.f32.xlu0 %v889
        %v891 = vpop.xlane.xlu0 %890
        %v892 = vsel %vm240, %v887, -inf
        %893 = vmax.xlane.f32.xlu0 %v892
        %v894 = vpop.xlane.xlu0 %893
        %v895 = vsub.f32 %v884, %v891
        %v896 = vsub.f32 %v887, %v894
        %v897 = vmul.f32 %v895, 1.442695
        %v898 = vpow.pop %v897
        %v899 = vmul.f32 %v896, 1.442695
        %v900 = vpow.pop %v899
        %v901 = vsel %vm240, %v898, 0.0
        %902 = vadd.xlane.f32.xlu0 %v901
        %v903 = vpop.xlane.xlu0 %902
        %v904 = vsel %vm240, %v900, 0.0
        %905 = vadd.xlane.f32.xlu0 %v904
        %v906 = vpop.xlane.xlu0 %905
        %v907 = vrcp.pop %v903
        %v908 = vmul.f32 %v903, %v907
        %v909 = vsub.f32 1.0, %v908
        %v910 = vmul.f32 %v907, %v909
        %v911 = vadd.f32 %v907, %v910
        %vm912 = vweird.f32 %v903
        %vm913 = vweird.f32 %v907
        %vm914 = vmor %vm912, %vm913
        %v915 = vsel %vm914, %v907, %v911
        %v916 = vand.u32 2147483647, %v903
        %vm917 = vcmp.eq.f32.partialorder %v916, 8.507059e+37
        %v918 = vand.u32 %v903, 2147483648
        %v919 = vor.u32 1.1754944e-38, %v918
        %v920 = vsel %vm917, %v919, %v915
        %v921 = vmul.f32 %v898, %v920
        %v922 = vrcp.pop %v906
        %v923 = vmul.f32 %v906, %v922
        %v924 = vsub.f32 1.0, %v923
        %v925 = vmul.f32 %v922, %v924
        %v926 = vadd.f32 %v922, %v925
        %vm927 = vweird.f32 %v906
        %vm928 = vweird.f32 %v922
        %vm929 = vmor %vm927, %vm928
        %v930 = vsel %vm929, %v922, %v926
        %v931 = vand.u32 2147483647, %v906
        %vm932 = vcmp.eq.f32.partialorder %v931, 8.507059e+37
        %v933 = vand.u32 %v906, 2147483648
        %v934 = vor.u32 1.1754944e-38, %v933
        %v935 = vsel %vm932, %v934, %v930
        %v936 = vmul.f32 %v900, %v935
        %937 = vrot.lane.b32.xlu0 %v220, 32
        %v938 = vpop.permute.xlu0 %937
        %939 = vrot.lane.b32.xlu0 %v221, 32
        %v940 = vpop.permute.xlu0 %939
        %v944 = vsel %vm240, %v921, 0
        %v947 = vsel %vm240, %v936, 0
        %949 = vmatpush.msra.mxu0 0.0
        %950 = vmatpush.msra.mxu0 0.0
        %951 = vmatpush.msra.mxu0 0.0
        %952 = vmatpush.msra.mxu0 0.0
        %953 = vmatpush.msra.mxu0 0.0
        %954 = vmatpush.msra.mxu0 0.0
        %955 = vmatpush.msra.mxu0 0.0
        %956 = vmatpush.msra.mxu0 0.0
        %957 = vmatpush.msra.mxu0 0.0
        %958 = vmatpush.msra.mxu0 0.0
        %959 = vmatpush.msra.mxu0 0.0
        %960 = vmatpush.msra.mxu0 0.0
        %961 = vmatpush.msra.mxu0 0.0
        %962 = vmatpush.msra.mxu0 0.0
        %963 = vmatpush.msra.mxu0 %v940
        %964 = vmatpush.msra.mxu0 %v938
        %965 = vmatmul.f32.gmra.mxu0 %v944
        %v966 = vpop.f32.mrf.mxu0
        %v967 = vadd.f32 0.0, %v966
        %968 = vmatmul.f32.gmra.mxu0 %v947
        %v969 = vpop.f32.mrf.mxu0
        %v970 = vadd.f32 0.0, %v969
        %971 = vdwg.mxu0
        %974 = vrot.lane.b32.xlu0 %v583, 32
        %v975 = vpop.permute.xlu0 %974
        %976 = vrot.lane.b32.xlu0 %v586, 32
        %v977 = vpop.permute.xlu0 %976
        %982 = vrot.lane.b32.xlu0 %v775, 64
        %v983 = vpop.permute.xlu0 %982
        %984 = vrot.lane.b32.xlu0 %v778, 64
        %v985 = vpop.permute.xlu0 %984
        %990 = vrot.lane.b32.xlu0 %v967, 96
        %v991 = vpop.permute.xlu0 %990
        %992 = vrot.lane.b32.xlu0 %v970, 96
        %v993 = vpop.permute.xlu0 %992
        %v996 = vsel %vm279, %v387, %v975
        %v997 = vsel %vm279, %v390, %v977
        %vm998 = vcmask 523264
        %v999 = vsel %vm998, %v996, %v983
        %v1000 = vsel %vm998, %v997, %v985
        %vm1001 = vcmask 785408
        %v1002 = vsel %vm1001, %v999, %v991
        %v1003 = vsel %vm1001, %v1000, %v993
        %1004 = vst [vmem:[%s211] sm:$0xff] %v1002
        %1005 = vst [vmem:[%s211 + $0x8] sm:$0xff] %v1003
        %p1006 = scmp.lt.s32.totalorder %s16, 1
        %s1007 = scalar_select %p1006, %s16, 1
        %s1008 = smul.addr %s1007, 2
        %s1009 = smul.addr %s1008, 8
        %s1010 = scalar_lea.vmem %s4, %s1009
        // Predicated region
        $region41: #{health_attention.4} parent=35 // pred_check
          %p1011 = pneg %p123
        $region42: #{health_attention.4} parent=35 // pred_check_branch
          %1013 = sbr.rel (%p1011) target = $region44
        $region43: #{health_attention.4} parent=35 // pred_region
          _
        $region44: #{health_attention.4} parent=35 // pred_fallthru
          _
      $region36: #{health_attention.4} parent=5 // pred_fallthru
        _
      %p1014 = scmp.le.s32.totalorder 2, %s11
      // Predicated region
      $region45: #{health_attention.4} parent=5 // pred_check
        %p1015 = pneg %p1014
      $region46: #{health_attention.4} parent=5 // pred_check_branch
        %1017 = sbr.rel (%p1015) target = $region48
      $region47: #{health_attention.4} parent=5 // pred_region
        %s1018 = ssub.s32 %s11, 2
        // Predicated region
        $region49: #{health_attention.4} parent=47 // pred_check
          %p1019 = pneg %p129
        $region50: #{health_attention.4} parent=47 // pred_check_branch
          %1021 = sbr.rel (%p1019) target = $region52
        $region51: #{health_attention.4} parent=47 // pred_region
          %p1022 = scmp.lt.s32.totalorder %s17, 1
          %s1023 = scalar_select %p1022, %s17, 1
          %s1024 = smul.addr %s1023, 2
          %s1025 = smul.addr %s1024, 8
          %s1026 = scalar_lea.vmem %s4, %s1025
        $region52: #{health_attention.4} parent=47 // pred_fallthru
          _
      $region48: #{health_attention.4} parent=5 // pred_fallthru
        _
    $region6: #{health_attention.4} parent=1 // loop_footer
      %s15 = sadd.s32 1, %s11
    $region7: #{health_attention.4} parent=1 // loop_footer_branch
      %10 = sbr.rel target = $region3
    $region8: #{health_attention.4} parent=1 // loop_exit
      _
    %1027 = vsyncpa [#allocation3], 1
    %s1028 = scalar_lea.sflag [#allocation3], 1
    %1029 = vsyncpa %s1028, 1

</llo_original>
